<compile_context>
chip_gen: v6e
topology: v6e:2x2x1
jax: 0.10.0
libtpu: 0.0.40
codegen_flags: <defaults>
</compile_context>

<pallas_src>
import functools

import jax
import jax.numpy as jnp
from jax.experimental import pallas as pl
from jax.experimental.pallas import tpu as pltpu


def _round_up(x, m):
    return ((x + m - 1) // m) * m


def gru_kernel(emb_ref, mask_ref, wzh_ref, bzh_ref, out_ref, *, hp, h, mxu_dtype):
    """One row-tile of the (h0 == 0) GRU step.

    emb_ref : (tile_n, E)     input rows (any float dtype)
    mask_ref: (tile_n, 1)     per-row mask, f32
    wzh_ref : (E, 2*Hp)       [-W_z | W_h] packed, lane-padded, mxu_dtype
    bzh_ref : (1, 2*Hp)       [-b_z | b_h] packed, lane-padded, f32
    out_ref : (tile_n, H)     output tile, f32
    """
    a = emb_ref[...].astype(mxu_dtype)
    # Single fused MXU matmul over the packed [-W_z | W_h] operand; f32 accum.
    s = jnp.dot(a, wzh_ref[...], preferred_element_type=jnp.float32) + bzh_ref[...]

    one_minus_z = jax.nn.sigmoid(s[:, :h])        # sigmoid(-x) == 1 - z (EUP)
    h_tilde = jnp.tanh(s[:, hp:hp + h])           # candidate hidden (EUP)

    # h0 == 0  =>  out = mask * (1-z) * h_tilde   (all gate math in f32).
    out_ref[...] = mask_ref[...] * one_minus_z * h_tilde


def ehr_gru_forward(emb, mask, params, *, tile_n=None, mxu_dtype=jnp.bfloat16):
    """emb: (T, B, E) float, mask: (T, B) float -> (T, B, H) f32."""
    T, B, E = emb.shape
    H = params["W_z"].shape[1]
    N = T * B
    Hp = _round_up(H, 128)            # packed-weight lane stride (vreg boundary)

    if tile_n is None:
        # Big tiles (mem-bound), but always >= 2 grid steps so both v7x
        # TensorCores get work; multiple of 8 for sublane alignment.
        tile_n = min(2048, max(8, _round_up(pl.cdiv(N, 2), 8)))
    assert tile_n % 8 == 0
    grid = pl.cdiv(N, tile_n)

    # Free reshapes only -- no padding / copying of the big streams.
    emb2d = emb.reshape(N, E)
    mask2d = mask.reshape(N, 1).astype(jnp.float32)

    # Pack [-W_z | W_h] (mxu_dtype) and [-b_z | b_h] (f32).  One-time, tiny.
    # (W_r, U_z, U_r, U_h, b_r are mathematically dead because h0 == 0.)
    wzh = jnp.zeros((E, 2 * Hp), mxu_dtype)
    wzh = wzh.at[:, :H].set(-params["W_z"].astype(mxu_dtype))
    wzh = wzh.at[:, Hp:Hp + H].set(params["W_h"].astype(mxu_dtype))
    bzh = jnp.zeros((1, 2 * Hp), jnp.float32)
    bzh = bzh.at[0, :H].set(-params["b_z"].astype(jnp.float32))
    bzh = bzh.at[0, Hp:Hp + H].set(params["b_h"].astype(jnp.float32))

    out2d = pl.pallas_call(
        functools.partial(gru_kernel, hp=Hp, h=H, mxu_dtype=mxu_dtype),
        out_shape=jax.ShapeDtypeStruct((N, H), jnp.float32),
        grid_spec=pltpu.PrefetchScalarGridSpec(
            num_scalar_prefetch=0,
            grid=(grid,),
            in_specs=[
                pl.BlockSpec((tile_n, E), lambda i: (i, 0)),      # emb rows
                pl.BlockSpec((tile_n, 1), lambda i: (i, 0)),      # mask rows
                pl.BlockSpec((E, 2 * Hp), lambda i: (0, 0)),      # packed weights
                pl.BlockSpec((1, 2 * Hp), lambda i: (0, 0)),      # packed biases
            ],
            out_specs=pl.BlockSpec((tile_n, H), lambda i: (i, 0)),
        ),
        compiler_params=pltpu.CompilerParams(
            dimension_semantics=("parallel",),
            vmem_limit_bytes=32 * 1024 * 1024),
    )(emb2d, mask2d, wzh, bzh)

    return out2d.reshape(T, B, H)


def ehr_gru_reference(emb, mask, params):
    """Pure-JAX reference mirroring the PyTorch forward EXACTLY (incl. dead terms)."""
    T, B, E = emb.shape
    H = params["U_z"].shape[0]
    h = jnp.zeros((1, B, H), dtype=jnp.float32)
    z = jax.nn.sigmoid(emb @ params["W_z"] + h @ params["U_z"] + params["b_z"])
    r = jax.nn.sigmoid(emb @ params["W_r"] + h @ params["U_r"] + params["b_r"])
    h_tilde = jnp.tanh(emb @ params["W_h"] + (r * h) @ params["U_h"] + params["b_h"])
    h_new = z * h + (1.0 - z) * h_tilde
    return mask[:, :, None] * h_new + (1.0 - mask)[:, :, None] * h


def _make_params(key, E, H):
    keys = jax.random.split(key, 9)
    return {
        "W_z": jax.random.normal(keys[0], (E, H), jnp.float32) * 0.01,
        "W_r": jax.random.normal(keys[1], (E, H), jnp.float32) * 0.01,
        "W_h": jax.random.normal(keys[2], (E, H), jnp.float32) * 0.01,
        "U_z": jax.random.normal(keys[3], (H, H), jnp.float32) * 0.01,
        "U_r": jax.random.normal(keys[4], (H, H), jnp.float32) * 0.01,
        "U_h": jax.random.normal(keys[5], (H, H), jnp.float32) * 0.01,
        "b_z": jax.random.normal(keys[6], (H,), jnp.float32),
        "b_r": jax.random.normal(keys[7], (H,), jnp.float32),
        "b_h": jax.random.normal(keys[8], (H,), jnp.float32),
    }
    # TODO(synk): Custom_Embedding (tanh(x @ W_emb + b_emb)) and W_output/b_output
    # are unused by EHR_GRU.forward(emb, mask); only the GRU step is kernelized.


if __name__ == "__main__":
    key = jax.random.PRNGKey(0)
    k_param, k_emb, k_mask, k_param2, k_emb2, k_mask2 = jax.random.split(key, 6)

    # --- primary: real model dims (E = H = 200, B = 100), bf16 MXU operands ---
    T, B, E, H = 4, 100, 200, 200
    params = _make_params(k_param, E, H)
    emb = jax.random.normal(k_emb, (T, B, E), jnp.float32)
    mask = (jax.random.uniform(k_mask, (T, B)) > 0.3).astype(jnp.float32)

    out = jax.block_until_ready(ehr_gru_forward(emb, mask, params))
    ref = jax.block_until_ready(ehr_gru_reference(emb, mask, params))
    assert out.shape == (T, B, H)
    err = float(jnp.max(jnp.abs(out - ref)))
    assert err < 2e-2, err          # bf16 MXU operands -> loosened tolerance

    # --- secondary: f32 MXU path, ragged N (30 rows, not a tile multiple) and
    #     non-128-multiple E/H -> exercises boundary handling, tight tolerance ---
    T2, B2, E2, H2 = 3, 10, 40, 72
    params2 = _make_params(k_param2, E2, H2)
    emb2 = jax.random.normal(k_emb2, (T2, B2, E2), jnp.float32)
    mask2 = (jax.random.uniform(k_mask2, (T2, B2)) > 0.3).astype(jnp.float32)

    out2 = jax.block_until_ready(
        ehr_gru_forward(emb2, mask2, params2, mxu_dtype=jnp.float32))
    ref2 = jax.block_until_ready(ehr_gru_reference(emb2, mask2, params2))
    assert out2.shape == (T2, B2, H2)
    err2 = float(jnp.max(jnp.abs(out2 - ref2)))
    assert err2 < 2e-5, err2

    print("KERNEL_OK")
</pallas_src>

<mosaic_0001>
module attributes {stable_mosaic.version = 11 : i64} {
  func.func @gru_kernel(%arg0: i32, %arg1: memref<200x200xf32, #tpu.memory_space<vmem>>, %arg2: memref<200x1xf32, #tpu.memory_space<vmem>>, %arg3: memref<200x512xbf16, #tpu.memory_space<vmem>>, %arg4: memref<1x512xf32, #tpu.memory_space<vmem>>, %arg5: memref<200x200xf32, #tpu.memory_space<vmem>>) attributes {dimension_semantics = [#tpu.dimension_semantics<parallel>], iteration_bounds = array<i64: 2>, scalar_prefetch = 0 : i64, scratch_operands = 0 : i64, tpu.core_type = #tpu.core_type<tc>, window_params = [{transform_indices = @transform_0, window_bounds = array<i64: 200, 200>}, {transform_indices = @transform_1, window_bounds = array<i64: 200, 1>}, {pipeline_mode = #tpu.pipeline_mode<synchronous>, transform_indices = @transform_2, window_bounds = array<i64: 200, 512>}, {pipeline_mode = #tpu.pipeline_mode<synchronous>, transform_indices = @transform_3, window_bounds = array<i64: 1, 512>}, {transform_indices = @transform_4, window_bounds = array<i64: 200, 200>}]} {
    %c0 = arith.constant 0 : index
    %c0_0 = arith.constant 0 : index
    %0 = vector.load %arg1[%c0, %c0_0] : memref<200x200xf32, #tpu.memory_space<vmem>>, vector<200x200xf32>
    %1 = arith.truncf %0 : vector<200x200xf32> to vector<200x200xbf16>
    %c0_1 = arith.constant 0 : index
    %c0_2 = arith.constant 0 : index
    %2 = vector.load %arg3[%c0_1, %c0_2] : memref<200x512xbf16, #tpu.memory_space<vmem>>, vector<200x512xbf16>
    %cst = arith.constant dense<0.000000e+00> : vector<200x512xf32>
    %3 = tpu.matmul %1, %2, %cst {dimension_numbers = #tpu.dot_dimension_numbers<[1], [0], [0], [1], [0, 0, 1, 1], [], []>} : vector<200x200xbf16>, vector<200x512xbf16>, vector<200x512xf32> -> vector<200x512xf32>
    %c0_3 = arith.constant 0 : index
    %c0_4 = arith.constant 0 : index
    %4 = vector.load %arg4[%c0_3, %c0_4] : memref<1x512xf32, #tpu.memory_space<vmem>>, vector<1x512xf32>
    %5 = vector.broadcast %4 : vector<1x512xf32> to vector<200x512xf32>
    %6 = arith.addf %3, %5 : vector<200x512xf32>
    %7 = vector.extract_strided_slice %6 {offsets = [0, 0], sizes = [200, 200], strides = [1, 1]} : vector<200x512xf32> to vector<200x200xf32>
    %8 = arith.negf %7 : vector<200x200xf32>
    %9 = math.exp %8 : vector<200x200xf32>
    %cst_5 = arith.constant 1.000000e+00 : f32
    %10 = vector.broadcast %cst_5 : f32 to vector<200x200xf32>
    %11 = arith.addf %10, %9 : vector<200x200xf32>
    %12 = arith.divf %10, %11 : vector<200x200xf32>
    %13 = vector.extract_strided_slice %6 {offsets = [0, 256], sizes = [200, 200], strides = [1, 1]} : vector<200x512xf32> to vector<200x200xf32>
    %14 = math.tanh %13 : vector<200x200xf32>
    %c0_6 = arith.constant 0 : index
    %c0_7 = arith.constant 0 : index
    %15 = vector.load %arg2[%c0_6, %c0_7] : memref<200x1xf32, #tpu.memory_space<vmem>>, vector<200x1xf32>
    %16 = vector.broadcast %15 : vector<200x1xf32> to vector<200x200xf32>
    %17 = arith.mulf %16, %12 : vector<200x200xf32>
    %18 = arith.mulf %17, %14 : vector<200x200xf32>
    %c0_8 = arith.constant 0 : index
    %c0_9 = arith.constant 0 : index
    %19 = vector.load %arg5[%c0_8, %c0_9] : memref<200x200xf32, #tpu.memory_space<vmem>>, vector<200x200xf32>
    tpu.vector_store %arg5[%c0_8, %c0_9], %18 {strides = array<i32>} : memref<200x200xf32, #tpu.memory_space<vmem>>, vector<200x200xf32>,
    return
  }
  func.func @transform_0(%arg0: i32) -> (i32, i32) {
    %c0_i32 = arith.constant 0 : i32
    %c0_i32_0 = arith.constant 0 : i32
    return %arg0, %c0_i32 : i32, i32
  }
  func.func @transform_1(%arg0: i32) -> (i32, i32) {
    %c0_i32 = arith.constant 0 : i32
    %c0_i32_0 = arith.constant 0 : i32
    return %arg0, %c0_i32 : i32, i32
  }
  func.func @transform_2(%arg0: i32) -> (i32, i32) {
    %c0_i32 = arith.constant 0 : i32
    %c0_i32_0 = arith.constant 0 : i32
    %c0_i32_1 = arith.constant 0 : i32
    return %c0_i32, %c0_i32_0 : i32, i32
  }
  func.func @transform_3(%arg0: i32) -> (i32, i32) {
    %c0_i32 = arith.constant 0 : i32
    %c0_i32_0 = arith.constant 0 : i32
    %c0_i32_1 = arith.constant 0 : i32
    return %c0_i32, %c0_i32_0 : i32, i32
  }
  func.func @transform_4(%arg0: i32) -> (i32, i32) {
    %c0_i32 = arith.constant 0 : i32
    %c0_i32_0 = arith.constant 0 : i32
    return %arg0, %c0_i32 : i32, i32
  }
}

</mosaic_0001>

<llo_original>
// kernel: tpu_custom_call.1
$region0: #{tpu_custom_call.1}
  #allocation0 [shape = 'u32[]', space=smem, size = 0x4, offset = 0x4, fixed_abs, tag = 'smem constant byte address 0x4 - core index']
  #allocation1 [shape = 'u32[144,128]{1,0:T(1,128)}', space=vmem, size = 0x12000, scoped, tag = 'internal scratch']
  %s0 = inlined_call_operand.hbm [shape: f32[400,200], index: 0, kind: input, shape index: {}]
  %s1 = inlined_call_operand.vmem [shape: f32[400,1], index: 1, kind: input, shape index: {}]
  %s2 = inlined_call_operand.vmem [shape: bf16[200,512], index: 2, kind: input, shape index: {}]
  %s3 = inlined_call_operand.vmem [shape: f32[1,512], index: 3, kind: input, shape index: {}]
  %s4 = inlined_call_operand.hbm [shape: f32[400,200], index: 4, kind: output, shape index: {}]
  %s5 = sld [smem:[#allocation0]]
  $region53: #{tpu_custom_call.1} parent=0
    _
  %s7 = ssub.s32 1, %s5
  %s8 = scalar_select 0, %s7, %s5
  $region1: #{tpu_custom_call.1} parent=0
    #allocation2 [shape = 'u8[409600]{0}', space=vmem, size = 0x64000, scoped, tag = 'input window, operand 0']
    #allocation3 [shape = 's32[2]{0}', space=sflag, size = 0x8, scoped, tag = 'scoped memory for tpu_custom_call.1']
    #allocation4 [shape = 's32[2]{0}', space=sflag, size = 0x8, scoped, tag = 'scoped memory for tpu_custom_call.1']
    #allocation5 [shape = 'u8[409600]{0}', space=vmem, size = 0x64000, scoped, tag = 'output window, operand 0']
    %9 = vsyncpa [#allocation3], 0
    %s10 = scalar_lea.sflag [#allocation3], 1
    %11 = vsyncpa %s10, 0
    %12 = vsyncpa [#allocation4], 0
    %s13 = scalar_lea.sflag [#allocation4], 1
    %14 = vsyncpa %s13, 0
    loop: start=0, step=1, limit=4
    $region2: #{tpu_custom_call.1} parent=1 // loop_pre_header
      _
    $region3: #{tpu_custom_call.1} parent=1 // loop_header
      %s16 = sphi 0, %s20
      %p17 = scmp.ge.s32.totalorder %s16, 4
      %s26 = sphi 0, %s28
      %s29 = sphi 0, %s26
      %s30 = sphi 0, %s29
      %s46 = sphi 0, %s30
      %s52 = sphi 0, %s54
      %s55 = sphi 0, %s52
      %s56 = sphi 0, %s55
      %s72 = sphi 0, %s56
      %s76 = sphi 0, %s76
      %s78 = sphi 0, %s76
      %s79 = sphi 0, %s78
      %s93 = sphi 0, %s79
      %s97 = sphi 0, %s97
      %s99 = sphi 0, %s97
      %s100 = sphi 0, %s99
      %s114 = sphi 0, %s100
      %s120 = sphi 0, %s122
      %s123 = sphi 0, %s120
      %s124 = sphi 0, %s123
      %s140 = sphi 0, %s124
    $region4: #{tpu_custom_call.1} parent=1 // loop_header_branch
      %19 = sbr.rel (%p17) target = $region8
    $region5: #{tpu_custom_call.1} parent=1 // loop_body
      %s21 = ssub.s32 %s16, 1
      %s22 = ssub.s32 %s16, 2
      %s23 = sadd.s32 %s16, 1
      %s24 = ssub.s32 %s16, %s23
      %p25 = scmp.eq.s32.totalorder %s24, 0
      %s27 = sadd.s32 %s26, 1
      %s28 = scalar_select %p25, %s26, %s27
      %p31 = pneg %p25
      %p32 = scmp.eq.s32.totalorder %s16, 1
      %p33 = por %p31, %p32
      %p34 = scmp.ne.s32.totalorder %s26, %s29
      %p35 = scmp.eq.s32.totalorder %s16, 0
      %p36 = por %p34, %p35
      %p37 = scmp.ne.s32.totalorder %s26, %s29
      %p38 = scmp.eq.s32.totalorder %s21, 1
      %p39 = por %p37, %p38
      %p40 = scmp.ne.s32.totalorder %s29, %s30
      %p41 = scmp.eq.s32.totalorder %s21, 0
      %p42 = por %p40, %p41
      %p43 = scmp.ne.s32.totalorder %s29, %s30
      %p44 = scmp.eq.s32.totalorder %s22, 1
      %p45 = por %p43, %p44
      %p47 = scmp.ne.s32.totalorder %s30, %s46
      %p48 = scmp.eq.s32.totalorder %s22, 0
      %p49 = por %p47, %p48
      %s50 = ssub.s32 %s16, %s23
      %p51 = scmp.eq.s32.totalorder %s50, 0
      %s53 = sadd.s32 %s52, 1
      %s54 = scalar_select %p51, %s52, %s53
      %p57 = pneg %p51
      %p58 = scmp.eq.s32.totalorder %s16, 1
      %p59 = por %p57, %p58
      %p60 = scmp.ne.s32.totalorder %s52, %s55
      %p61 = scmp.eq.s32.totalorder %s16, 0
      %p62 = por %p60, %p61
      %p63 = scmp.ne.s32.totalorder %s52, %s55
      %p64 = scmp.eq.s32.totalorder %s21, 1
      %p65 = por %p63, %p64
      %p66 = scmp.ne.s32.totalorder %s55, %s56
      %p67 = scmp.eq.s32.totalorder %s21, 0
      %p68 = por %p66, %p67
      %p69 = scmp.ne.s32.totalorder %s55, %s56
      %p70 = scmp.eq.s32.totalorder %s22, 1
      %p71 = por %p69, %p70
      %p73 = scmp.ne.s32.totalorder %s56, %s72
      %p74 = scmp.eq.s32.totalorder %s22, 0
      %p75 = por %p73, %p74
      %s77 = sadd.s32 %s76, 1
      %p80 = scmp.eq.s32.totalorder %s16, 1
      %p81 = scmp.ne.s32.totalorder %s76, %s78
      %p82 = scmp.eq.s32.totalorder %s16, 0
      %p83 = por %p81, %p82
      %p84 = scmp.ne.s32.totalorder %s76, %s78
      %p85 = scmp.eq.s32.totalorder %s21, 1
      %p86 = por %p84, %p85
      %p87 = scmp.ne.s32.totalorder %s78, %s79
      %p88 = scmp.eq.s32.totalorder %s21, 0
      %p89 = por %p87, %p88
      %p90 = scmp.ne.s32.totalorder %s78, %s79
      %p91 = scmp.eq.s32.totalorder %s22, 1
      %p92 = por %p90, %p91
      %p94 = scmp.ne.s32.totalorder %s79, %s93
      %p95 = scmp.eq.s32.totalorder %s22, 0
      %p96 = por %p94, %p95
      %s98 = sadd.s32 %s97, 1
      %p101 = scmp.eq.s32.totalorder %s16, 1
      %p102 = scmp.ne.s32.totalorder %s97, %s99
      %p103 = scmp.eq.s32.totalorder %s16, 0
      %p104 = por %p102, %p103
      %p105 = scmp.ne.s32.totalorder %s97, %s99
      %p106 = scmp.eq.s32.totalorder %s21, 1
      %p107 = por %p105, %p106
      %p108 = scmp.ne.s32.totalorder %s99, %s100
      %p109 = scmp.eq.s32.totalorder %s21, 0
      %p110 = por %p108, %p109
      %p111 = scmp.ne.s32.totalorder %s99, %s100
      %p112 = scmp.eq.s32.totalorder %s22, 1
      %p113 = por %p111, %p112
      %p115 = scmp.ne.s32.totalorder %s100, %s114
      %p116 = scmp.eq.s32.totalorder %s22, 0
      %p117 = por %p115, %p116
      %s118 = ssub.s32 %s16, %s23
      %p119 = scmp.eq.s32.totalorder %s118, 0
      %s121 = sadd.s32 %s120, 1
      %s122 = scalar_select %p119, %s120, %s121
      %p125 = pneg %p119
      %p126 = scmp.eq.s32.totalorder %s16, 1
      %p127 = por %p125, %p126
      %p128 = scmp.ne.s32.totalorder %s120, %s123
      %p129 = scmp.eq.s32.totalorder %s16, 0
      %p130 = por %p128, %p129
      %p131 = scmp.ne.s32.totalorder %s120, %s123
      %p132 = scmp.eq.s32.totalorder %s21, 1
      %p133 = por %p131, %p132
      %p134 = scmp.ne.s32.totalorder %s123, %s124
      %p135 = scmp.eq.s32.totalorder %s21, 0
      %p136 = por %p134, %p135
      %p137 = scmp.ne.s32.totalorder %s123, %s124
      %p138 = scmp.eq.s32.totalorder %s22, 1
      %p139 = por %p137, %p138
      %p141 = scmp.ne.s32.totalorder %s124, %s140
      %p142 = scmp.eq.s32.totalorder %s22, 0
      %p143 = por %p141, %p142
      %p144 = scmp.le.s32.totalorder 1, %s16
      %p145 = scmp.lt.s32.totalorder %s16, 3
      %p146 = pnand %p144, %p145
      %p147 = pneg %p146
      // Predicated region
      $region9: #{tpu_custom_call.1} parent=5 // pred_check
        _
      $region10: #{tpu_custom_call.1} parent=5 // pred_check_branch
        %149 = sbr.rel (%p146) target = $region12
      $region11: #{tpu_custom_call.1} parent=5 // pred_region
        %s150 = ssub.s32 %s16, 1
        // Predicated region
        $region13: #{tpu_custom_call.1} parent=11 // pred_check
          %p151 = pneg %p89
        $region14: #{tpu_custom_call.1} parent=11 // pred_check_branch
          %153 = sbr.rel (%p151) target = $region16
        $region15: #{tpu_custom_call.1} parent=11 // pred_region
          _
        $region16: #{tpu_custom_call.1} parent=11 // pred_fallthru
          _
        // Predicated region
        $region17: #{tpu_custom_call.1} parent=11 // pred_check
          %p154 = pneg %p110
        $region18: #{tpu_custom_call.1} parent=11 // pred_check_branch
          %156 = sbr.rel (%p154) target = $region20
        $region19: #{tpu_custom_call.1} parent=11 // pred_region
          _
        $region20: #{tpu_custom_call.1} parent=11 // pred_fallthru
          _
      $region12: #{tpu_custom_call.1} parent=5 // pred_fallthru
        _
      %p157 = scmp.lt.s32.totalorder %s16, 2
      // Predicated region
      $region21: #{tpu_custom_call.1} parent=5 // pred_check
        %p158 = pneg %p157
      $region22: #{tpu_custom_call.1} parent=5 // pred_check_branch
        %160 = sbr.rel (%p158) target = $region24
      $region23: #{tpu_custom_call.1} parent=5 // pred_region
        // Predicated region
        $region25: #{tpu_custom_call.1} parent=23 // pred_check
          %p161 = pneg %p36
        $region26: #{tpu_custom_call.1} parent=23 // pred_check_branch
          %163 = sbr.rel (%p161) target = $region28
        $region27: #{tpu_custom_call.1} parent=23 // pred_region
          %s164 = sand.u32 %s26, 1
          %s165 = scalar_lea.sflag [#allocation3], %s164
          %s166 = sand.u32 %s26, 1
          %s167 = smul.addr %s166, 400
          %s168 = scalar_lea.vmem [#allocation2], %s167
          %s169 = smul.u32 25, %s16
          %s171 = ssub.s32 6400, 6400
          %172 = vsyncadd %s165, %s171
          %s173 = smul.addr %s169, 2
          %s174 = smul.addr %s173, 128
          %s175 = scalar_lea.hbm %s0, %s174
          %s176 = sshll.u32 %s168, 4
          %s177 = int_to_ptr.vmem [resolvable:$true] %s176
          %182 = dma.hbm_to_vmem [thread:$0]  %s175, 6400, %s177, %s165, 256, 256, 16
        $region28: #{tpu_custom_call.1} parent=23 // pred_fallthru
          _
        // Predicated region
        $region29: #{tpu_custom_call.1} parent=23 // pred_check
          %p183 = pneg %p62
        $region30: #{tpu_custom_call.1} parent=23 // pred_check_branch
          %185 = sbr.rel (%p183) target = $region32
        $region31: #{tpu_custom_call.1} parent=23 // pred_region
          %s186 = smul.u32 25, %s16
          %p187 = scmp.lt.s32.totalorder %s186, 49
          %s188 = scalar_select %p187, %s186, 49
          %s189 = smul.addr %s188, 8
          %s190 = scalar_lea.vmem %s1, %s189
          %s191 = smul.u32 25, %s16
        $region32: #{tpu_custom_call.1} parent=23 // pred_fallthru
          _
      $region24: #{tpu_custom_call.1} parent=5 // pred_fallthru
        _
      %p192 = scmp.le.s32.totalorder 1, %s16
      %p193 = scmp.lt.s32.totalorder %s16, 3
      %p194 = pnand %p192, %p193
      %p195 = pneg %p194
      // Predicated region
      $region33: #{tpu_custom_call.1} parent=5 // pred_check
        _
      $region34: #{tpu_custom_call.1} parent=5 // pred_check_branch
        %197 = sbr.rel (%p194) target = $region36
      $region35: #{tpu_custom_call.1} parent=5 // pred_region
        %s198 = ssub.s32 %s16, 1
        %s199 = sand.u32 %s29, 1
        %s200 = scalar_lea.sflag [#allocation3], %s199
        %s201 = sand.u32 %s29, 1
        %s202 = smul.addr %s201, 400
        %s203 = scalar_lea.vmem [#allocation2], %s202
        // Predicated region
        $region37: #{tpu_custom_call.1} parent=35 // pred_check
          %p204 = pneg %p42
        $region38: #{tpu_custom_call.1} parent=35 // pred_check_branch
          %206 = sbr.rel (%p204) target = $region40
        $region39: #{tpu_custom_call.1} parent=35 // pred_region
          %207 = dma.done %s200, 6400
        $region40: #{tpu_custom_call.1} parent=35 // pred_fallthru
          _
        %s208 = sand.u32 %s29, 1
        %s209 = scalar_lea.sflag [#allocation3], %s208
        %s210 = sand.u32 %s29, 1
        %s211 = smul.addr %s210, 400
        %s212 = scalar_lea.vmem [#allocation2], %s211
        %p213 = pneg %p42
        %p214 = pneg %p39
        %s215 = smul.u32 25, %s21
        %p216 = scmp.lt.s32.totalorder %s215, 49
        %s217 = scalar_select %p216, %s215, 49
        %s218 = smul.addr %s217, 8
        %s219 = scalar_lea.vmem %s1, %s218
        %p220 = pneg %p68
        %p221 = pneg %p65
        %p222 = pneg %p89
        %p223 = pneg %p86
        %p224 = pneg %p110
        %p225 = pneg %p107
        %p226 = pneg %p136
        %p227 = pneg %p133
        %s228 = sand.u32 %s123, 1
        %s229 = scalar_lea.sflag [#allocation4], %s228
        %s230 = sand.u32 %s123, 1
        %s231 = smul.addr %s230, 400
        %s232 = scalar_lea.vmem [#allocation5], %s231
        %s233 = smul.u32 25, %s21
        %s234 = smul.u32 25, %s21
        %p235 = scmp.lt.s32.totalorder %s234, 49
        %s236 = scalar_select %p235, %s234, 49
        %s237 = smul.addr %s236, 8
        %s238 = scalar_lea.vmem %s1, %s237
        %s239 = smul.u32 25, %s21
        %s240 = smul.u32 25, %s21
        %v242 = vld [vmem:[%s203] sm:$0xff]
        %v243 = vld [vmem:[%s203 + $0x8] sm:$0xff]
        %v244 = vld [vmem:[%s203 + $0x10] sm:$0xff]
        %v245 = vld [vmem:[%s203 + $0x18] sm:$0xff]
        %v246 = vld [vmem:[%s203 + $0x20] sm:$0xff]
        %v247 = vld [vmem:[%s203 + $0x28] sm:$0xff]
        %v248 = vld [vmem:[%s203 + $0x30] sm:$0xff]
        %v249 = vld [vmem:[%s203 + $0x38] sm:$0xff]
        %v250 = vld [vmem:[%s203 + $0x40] sm:$0xff]
        %v251 = vld [vmem:[%s203 + $0x48] sm:$0xff]
        %v252 = vld [vmem:[%s203 + $0x50] sm:$0xff]
        %v253 = vld [vmem:[%s203 + $0x58] sm:$0xff]
        %v254 = vld [vmem:[%s203 + $0x60] sm:$0xff]
        %v255 = vld [vmem:[%s203 + $0x68] sm:$0xff]
        %v256 = vld [vmem:[%s203 + $0x70] sm:$0xff]
        %v257 = vld [vmem:[%s203 + $0x78] sm:$0xff]
        %v258 = vld [vmem:[%s203 + $0x80] sm:$0xff]
        %v259 = vld [vmem:[%s203 + $0x88] sm:$0xff]
        %v260 = vld [vmem:[%s203 + $0x90] sm:$0xff]
        %v261 = vld [vmem:[%s203 + $0x98] sm:$0xff]
        %v262 = vld [vmem:[%s203 + $0xa0] sm:$0xff]
        %v263 = vld [vmem:[%s203 + $0xa8] sm:$0xff]
        %v264 = vld [vmem:[%s203 + $0xb0] sm:$0xff]
        %v265 = vld [vmem:[%s203 + $0xb8] sm:$0xff]
        %v266 = vld [vmem:[%s203 + $0xc0] sm:$0xff]
        %v267 = vld [vmem:[%s203 + $0xc8] sm:$0xff]
        %v268 = vld [vmem:[%s203 + $0xd0] sm:$0xff]
        %v269 = vld [vmem:[%s203 + $0xd8] sm:$0xff]
        %v270 = vld [vmem:[%s203 + $0xe0] sm:$0xff]
        %v271 = vld [vmem:[%s203 + $0xe8] sm:$0xff]
        %v272 = vld [vmem:[%s203 + $0xf0] sm:$0xff]
        %v273 = vld [vmem:[%s203 + $0xf8] sm:$0xff]
        %v274 = vld [vmem:[%s203 + $0x100] sm:$0xff]
        %v275 = vld [vmem:[%s203 + $0x108] sm:$0xff]
        %v276 = vld [vmem:[%s203 + $0x110] sm:$0xff]
        %v277 = vld [vmem:[%s203 + $0x118] sm:$0xff]
        %v278 = vld [vmem:[%s203 + $0x120] sm:$0xff]
        %v279 = vld [vmem:[%s203 + $0x128] sm:$0xff]
        %v280 = vld [vmem:[%s203 + $0x130] sm:$0xff]
        %v281 = vld [vmem:[%s203 + $0x138] sm:$0xff]
        %v282 = vld [vmem:[%s203 + $0x140] sm:$0xff]
        %v283 = vld [vmem:[%s203 + $0x148] sm:$0xff]
        %v284 = vld [vmem:[%s203 + $0x150] sm:$0xff]
        %v285 = vld [vmem:[%s203 + $0x158] sm:$0xff]
        %v286 = vld [vmem:[%s203 + $0x160] sm:$0xff]
        %v287 = vld [vmem:[%s203 + $0x168] sm:$0xff]
        %v288 = vld [vmem:[%s203 + $0x170] sm:$0xff]
        %v289 = vld [vmem:[%s203 + $0x178] sm:$0xff]
        %v290 = vld [vmem:[%s203 + $0x180] sm:$0xff]
        %v291 = vld [vmem:[%s203 + $0x188] sm:$0xff]
        %v292 = vpack.c.bf16 %v244, %v242
        %v293 = vpack.c.bf16 %v245, %v243
        %v294 = vpack.c.bf16 %v248, %v246
        %v295 = vpack.c.bf16 %v249, %v247
        %v296 = vpack.c.bf16 %v252, %v250
        %v297 = vpack.c.bf16 %v253, %v251
        %v298 = vpack.c.bf16 %v256, %v254
        %v299 = vpack.c.bf16 %v257, %v255
        %v300 = vpack.c.bf16 %v260, %v258
        %v301 = vpack.c.bf16 %v261, %v259
        %v302 = vpack.c.bf16 %v264, %v262
        %v303 = vpack.c.bf16 %v265, %v263
        %v304 = vpack.c.bf16 %v268, %v266
        %v305 = vpack.c.bf16 %v269, %v267
        %v306 = vpack.c.bf16 %v272, %v270
        %v307 = vpack.c.bf16 %v273, %v271
        %v308 = vpack.c.bf16 %v276, %v274
        %v309 = vpack.c.bf16 %v277, %v275
        %v310 = vpack.c.bf16 %v280, %v278
        %v311 = vpack.c.bf16 %v281, %v279
        %v312 = vpack.c.bf16 %v284, %v282
        %v313 = vpack.c.bf16 %v285, %v283
        %v314 = vpack.c.bf16 %v288, %v286
        %v315 = vpack.c.bf16 %v289, %v287
        %v316 = vpack.c.bf16 %v290, %v290
        %v317 = vpack.c.bf16 %v291, %v291
        %v318 = vld [vmem:[%s2] sm:$0xff]
        %v319 = vld [vmem:[%s2 + $0x8] sm:$0xff]
        %v320 = vld [vmem:[%s2 + $0x10] sm:$0xff]
        %v321 = vld [vmem:[%s2 + $0x18] sm:$0xff]
        %v322 = vld [vmem:[%s2 + $0x20] sm:$0xff]
        %v323 = vld [vmem:[%s2 + $0x28] sm:$0xff]
        %v324 = vld [vmem:[%s2 + $0x30] sm:$0xff]
        %v325 = vld [vmem:[%s2 + $0x38] sm:$0xff]
        %v326 = vld [vmem:[%s2 + $0x40] sm:$0xff]
        %v327 = vld [vmem:[%s2 + $0x48] sm:$0xff]
        %v328 = vld [vmem:[%s2 + $0x50] sm:$0xff]
        %v329 = vld [vmem:[%s2 + $0x58] sm:$0xff]
        %v330 = vld [vmem:[%s2 + $0x60] sm:$0xff]
        %v331 = vld [vmem:[%s2 + $0x68] sm:$0xff]
        %v332 = vld [vmem:[%s2 + $0x70] sm:$0xff]
        %v333 = vld [vmem:[%s2 + $0x78] sm:$0xff]
        %v334 = vld [vmem:[%s2 + $0x80] sm:$0xff]
        %v335 = vld [vmem:[%s2 + $0x88] sm:$0xff]
        %v336 = vld [vmem:[%s2 + $0x90] sm:$0xff]
        %v337 = vld [vmem:[%s2 + $0x98] sm:$0xff]
        %v338 = vld [vmem:[%s2 + $0xa0] sm:$0xff]
        %v339 = vld [vmem:[%s2 + $0xa8] sm:$0xff]
        %v340 = vld [vmem:[%s2 + $0xb0] sm:$0xff]
        %v341 = vld [vmem:[%s2 + $0xb8] sm:$0xff]
        %v342 = vld [vmem:[%s2 + $0xc0] sm:$0xff]
        %v343 = vld [vmem:[%s2 + $0xc8] sm:$0xff]
        %v344 = vld [vmem:[%s2 + $0xd0] sm:$0xff]
        %v345 = vld [vmem:[%s2 + $0xd8] sm:$0xff]
        %v346 = vld [vmem:[%s2 + $0xe0] sm:$0xff]
        %v347 = vld [vmem:[%s2 + $0xe8] sm:$0xff]
        %v348 = vld [vmem:[%s2 + $0xf0] sm:$0xff]
        %v349 = vld [vmem:[%s2 + $0xf8] sm:$0xff]
        %v350 = vld [vmem:[%s2 + $0x100] sm:$0xff]
        %v351 = vld [vmem:[%s2 + $0x108] sm:$0xff]
        %v352 = vld [vmem:[%s2 + $0x110] sm:$0xff]
        %v353 = vld [vmem:[%s2 + $0x118] sm:$0xff]
        %v354 = vld [vmem:[%s2 + $0x120] sm:$0xff]
        %v355 = vld [vmem:[%s2 + $0x128] sm:$0xff]
        %v356 = vld [vmem:[%s2 + $0x130] sm:$0xff]
        %v357 = vld [vmem:[%s2 + $0x138] sm:$0xff]
        %v358 = vld [vmem:[%s2 + $0x140] sm:$0xff]
        %v359 = vld [vmem:[%s2 + $0x148] sm:$0xff]
        %v360 = vld [vmem:[%s2 + $0x150] sm:$0xff]
        %v361 = vld [vmem:[%s2 + $0x158] sm:$0xff]
        %v362 = vld [vmem:[%s2 + $0x160] sm:$0xff]
        %v363 = vld [vmem:[%s2 + $0x168] sm:$0xff]
        %v364 = vld [vmem:[%s2 + $0x170] sm:$0xff]
        %v365 = vld [vmem:[%s2 + $0x178] sm:$0xff]
        %v366 = vld [vmem:[%s2 + $0x180] sm:$0xff]
        %v367 = vld [vmem:[%s2 + $0x188] sm:$0xff]
        %v368 = vld [vmem:[%s3] sm:$0xf]
        %v370 = vlaneseq
        %v371 = vshrl.u32 %v370, 7
        %v372 = vsub.s32 0, %v371
        %v373 = vrot.slane %v368, %v372
        %v374 = vlaneseq
        %v375 = vshrl.u32 %v374, 7
        %v376 = vsub.s32 1, %v375
        %v377 = vrot.slane %v368, %v376
        %v378 = vlaneseq
        %v379 = vshrl.u32 %v378, 7
        %v380 = vsub.s32 2, %v379
        %v381 = vrot.slane %v368, %v380
        %v382 = vlaneseq
        %v383 = vshrl.u32 %v382, 7
        %v384 = vsub.s32 3, %v383
        %v385 = vrot.slane %v368, %v384
        %v440 = vunpack.c.l.b16 %v318
        %v441 = vunpack.c.h.b16 %v318
        %v442 = vunpack.c.l.b16 %v319
        %v443 = vunpack.c.h.b16 %v319
        %v444 = vunpack.c.l.b16 %v320
        %v445 = vunpack.c.h.b16 %v320
        %v446 = vunpack.c.l.b16 %v321
        %v447 = vunpack.c.h.b16 %v321
        %v448 = vunpack.c.l.b16 %v322
        %v449 = vunpack.c.h.b16 %v322
        %v450 = vunpack.c.l.b16 %v323
        %v451 = vunpack.c.h.b16 %v323
        %v452 = vunpack.c.l.b16 %v324
        %v453 = vunpack.c.h.b16 %v324
        %v454 = vunpack.c.l.b16 %v325
        %v455 = vunpack.c.h.b16 %v325
        %v456 = vunpack.c.l.b16 %v326
        %v457 = vunpack.c.h.b16 %v326
        %v458 = vunpack.c.l.b16 %v327
        %v459 = vunpack.c.h.b16 %v327
        %v460 = vunpack.c.l.b16 %v328
        %v461 = vunpack.c.h.b16 %v328
        %v462 = vunpack.c.l.b16 %v329
        %v463 = vunpack.c.h.b16 %v329
        %v464 = vunpack.c.l.b16 %v330
        %v465 = vunpack.c.h.b16 %v330
        %v466 = vunpack.c.l.b16 %v331
        %v467 = vunpack.c.h.b16 %v331
        %v468 = vunpack.c.l.b16 %v332
        %v469 = vunpack.c.h.b16 %v332
        %v470 = vunpack.c.l.b16 %v333
        %v471 = vunpack.c.h.b16 %v333
        %v472 = vunpack.c.l.b16 %v334
        %v473 = vunpack.c.h.b16 %v334
        %v474 = vunpack.c.l.b16 %v335
        %v475 = vunpack.c.h.b16 %v335
        %v476 = vunpack.c.l.b16 %v336
        %v477 = vunpack.c.h.b16 %v336
        %v478 = vunpack.c.l.b16 %v337
        %v479 = vunpack.c.h.b16 %v337
        %v480 = vunpack.c.l.b16 %v338
        %v481 = vunpack.c.h.b16 %v338
        %v482 = vunpack.c.l.b16 %v339
        %v483 = vunpack.c.h.b16 %v339
        %v484 = vunpack.c.l.b16 %v340
        %v485 = vunpack.c.h.b16 %v340
        %v486 = vunpack.c.l.b16 %v341
        %v487 = vunpack.c.h.b16 %v341
        %v488 = vunpack.c.l.b16 %v342
        %v489 = vunpack.c.h.b16 %v342
        %v490 = vunpack.c.l.b16 %v343
        %v491 = vunpack.c.h.b16 %v343
        %v492 = vunpack.c.l.b16 %v344
        %v493 = vunpack.c.h.b16 %v344
        %v494 = vunpack.c.l.b16 %v345
        %v495 = vunpack.c.h.b16 %v345
        %v496 = vunpack.c.l.b16 %v346
        %v497 = vunpack.c.h.b16 %v346
        %v498 = vunpack.c.l.b16 %v347
        %v499 = vunpack.c.h.b16 %v347
        %v500 = vunpack.c.l.b16 %v348
        %v501 = vunpack.c.h.b16 %v348
        %v502 = vunpack.c.l.b16 %v349
        %v503 = vunpack.c.h.b16 %v349
        %v504 = vunpack.c.l.b16 %v350
        %v505 = vunpack.c.h.b16 %v350
        %v506 = vunpack.c.l.b16 %v351
        %v507 = vunpack.c.h.b16 %v351
        %v508 = vunpack.c.l.b16 %v352
        %v509 = vunpack.c.h.b16 %v352
        %v510 = vunpack.c.l.b16 %v353
        %v511 = vunpack.c.h.b16 %v353
        %v512 = vunpack.c.l.b16 %v354
        %v513 = vunpack.c.h.b16 %v354
        %v514 = vunpack.c.l.b16 %v355
        %v515 = vunpack.c.h.b16 %v355
        %v516 = vunpack.c.l.b16 %v356
        %v517 = vunpack.c.h.b16 %v356
        %v518 = vunpack.c.l.b16 %v357
        %v519 = vunpack.c.h.b16 %v357
        %v520 = vunpack.c.l.b16 %v358
        %v521 = vunpack.c.h.b16 %v358
        %v522 = vunpack.c.l.b16 %v359
        %v523 = vunpack.c.h.b16 %v359
        %v524 = vunpack.c.l.b16 %v360
        %v525 = vunpack.c.h.b16 %v360
        %v526 = vunpack.c.l.b16 %v361
        %v527 = vunpack.c.h.b16 %v361
        %v528 = vunpack.c.l.b16 %v362
        %v529 = vunpack.c.h.b16 %v362
        %v530 = vunpack.c.l.b16 %v363
        %v531 = vunpack.c.h.b16 %v363
        %v532 = vunpack.c.l.b16 %v364
        %v533 = vunpack.c.h.b16 %v364
        %v534 = vunpack.c.l.b16 %v365
        %v535 = vunpack.c.h.b16 %v365
        %v536 = vunpack.c.l.b16 %v366
        %v537 = vunpack.c.h.b16 %v366
        %v538 = vunpack.c.l.b16 %v367
        %v539 = vunpack.c.h.b16 %v367
        %v540 = vpack.c.b16 %v444, %v440
        %v541 = vpack.c.b16 %v445, %v441
        %v542 = vpack.c.b16 %v446, %v442
        %v543 = vpack.c.b16 %v447, %v443
        %v544 = vpack.c.b16 %v452, %v448
        %v545 = vpack.c.b16 %v453, %v449
        %v546 = vpack.c.b16 %v454, %v450
        %v547 = vpack.c.b16 %v455, %v451
        %v548 = vpack.c.b16 %v460, %v456
        %v549 = vpack.c.b16 %v461, %v457
        %v550 = vpack.c.b16 %v462, %v458
        %v551 = vpack.c.b16 %v463, %v459
        %v552 = vpack.c.b16 %v468, %v464
        %v553 = vpack.c.b16 %v469, %v465
        %v554 = vpack.c.b16 %v470, %v466
        %v555 = vpack.c.b16 %v471, %v467
        %v556 = vpack.c.b16 %v476, %v472
        %v557 = vpack.c.b16 %v477, %v473
        %v558 = vpack.c.b16 %v478, %v474
        %v559 = vpack.c.b16 %v479, %v475
        %v560 = vpack.c.b16 %v484, %v480
        %v561 = vpack.c.b16 %v485, %v481
        %v562 = vpack.c.b16 %v486, %v482
        %v563 = vpack.c.b16 %v487, %v483
        %v564 = vpack.c.b16 %v492, %v488
        %v565 = vpack.c.b16 %v493, %v489
        %v566 = vpack.c.b16 %v494, %v490
        %v567 = vpack.c.b16 %v495, %v491
        %v568 = vpack.c.b16 %v500, %v496
        %v569 = vpack.c.b16 %v501, %v497
        %v570 = vpack.c.b16 %v502, %v498
        %v571 = vpack.c.b16 %v503, %v499
        %v572 = vpack.c.b16 %v508, %v504
        %v573 = vpack.c.b16 %v509, %v505
        %v574 = vpack.c.b16 %v510, %v506
        %v575 = vpack.c.b16 %v511, %v507
        %v576 = vpack.c.b16 %v516, %v512
        %v577 = vpack.c.b16 %v517, %v513
        %v578 = vpack.c.b16 %v518, %v514
        %v579 = vpack.c.b16 %v519, %v515
        %v580 = vpack.c.b16 %v524, %v520
        %v581 = vpack.c.b16 %v525, %v521
        %v582 = vpack.c.b16 %v526, %v522
        %v583 = vpack.c.b16 %v527, %v523
        %v584 = vpack.c.b16 %v532, %v528
        %v585 = vpack.c.b16 %v533, %v529
        %v586 = vpack.c.b16 %v534, %v530
        %v587 = vpack.c.b16 %v535, %v531
        %v588 = vpack.c.b16 %v536, %v536
        %v589 = vpack.c.b16 %v537, %v537
        %v590 = vpack.c.b16 %v538, %v538
        %v591 = vpack.c.b16 %v539, %v539
        %vm640 = vcmask 588800
        %v642 = vsel %vm640, %v293, 0
        %v645 = vsel %vm640, %v295, 0
        %v648 = vsel %vm640, %v297, 0
        %v651 = vsel %vm640, %v299, 0
        %v654 = vsel %vm640, %v301, 0
        %v657 = vsel %vm640, %v303, 0
        %v660 = vsel %vm640, %v305, 0
        %v663 = vsel %vm640, %v307, 0
        %v666 = vsel %vm640, %v309, 0
        %v669 = vsel %vm640, %v311, 0
        %v672 = vsel %vm640, %v313, 0
        %v675 = vsel %vm640, %v315, 0
        %v678 = vsel %vm640, %v317, 0
        %vm680 = vcmask 1043456
        %v682 = vsel %vm680, %v588, 0
        %v685 = vsel %vm680, %v589, 0
        %v688 = vsel %vm680, %v590, 0
        %v691 = vsel %vm680, %v591, 0
        %693 = vmatprep.subr.bf16.mxu0 %v569
        %694 = vmatpush1.bf16.msra.mxu0 %v568
        %695 = vmatprep.subr.bf16.mxu0 %v565
        %696 = vmatpush1.bf16.msra.mxu0 %v564
        %697 = vmatprep.subr.bf16.mxu0 %v561
        %698 = vmatpush1.bf16.msra.mxu0 %v560
        %699 = vmatprep.subr.bf16.mxu0 %v557
        %700 = vmatpush1.bf16.msra.mxu0 %v556
        %701 = vmatprep.subr.bf16.mxu0 %v553
        %702 = vmatpush1.bf16.msra.mxu0 %v552
        %703 = vmatprep.subr.bf16.mxu0 %v549
        %704 = vmatpush1.bf16.msra.mxu0 %v548
        %705 = vmatprep.subr.bf16.mxu0 %v545
        %706 = vmatpush1.bf16.msra.mxu0 %v544
        %707 = vmatprep.subr.bf16.mxu0 %v541
        %708 = vmatpush1.bf16.msra.mxu0 %v540
        %709 = vmatprep.subr.bf16.mxu0 0
        %710 = vmatpush2.bf16.msra.mxu0 0
        %711 = vmatprep.subr.bf16.mxu0 0
        %712 = vmatpush2.bf16.msra.mxu0 0
        %713 = vmatprep.subr.bf16.mxu0 0
        %714 = vmatpush2.bf16.msra.mxu0 0
        %715 = vmatprep.subr.bf16.mxu0 %v685
        %716 = vmatpush2.bf16.msra.mxu0 %v682
        %717 = vmatprep.subr.bf16.mxu0 %v585
        %718 = vmatpush2.bf16.msra.mxu0 %v584
        %719 = vmatprep.subr.bf16.mxu0 %v581
        %720 = vmatpush2.bf16.msra.mxu0 %v580
        %721 = vmatprep.subr.bf16.mxu0 %v577
        %722 = vmatpush2.bf16.msra.mxu0 %v576
        %723 = vmatprep.subr.bf16.mxu0 %v573
        %724 = vmatpush2.bf16.msra.mxu0 %v572
        %725 = vmatprep.mubr.bf16.mxu0 %v642
        %726 = vmatmul.mubr.bf16.gmra.mxu0 %v292
        %v727 = vpop.f32.mrf.mxu0
        %v728 = vadd.f32 %v373, %v727
        %v729 = vpop.f32.mrf.mxu0
        %v730 = vadd.f32 %v377, %v729
        %v731 = vpop.f32.mrf.mxu0
        %v732 = vadd.f32 %v373, %v731
        %v733 = vpop.f32.mrf.mxu0
        %v734 = vadd.f32 %v377, %v733
        %735 = vmatprep.mubr.bf16.mxu0 %v645
        %736 = vmatmul.mubr.bf16.gmra.mxu0 %v294
        %v737 = vpop.f32.mrf.mxu0
        %v738 = vadd.f32 %v373, %v737
        %v739 = vpop.f32.mrf.mxu0
        %v740 = vadd.f32 %v377, %v739
        %v741 = vpop.f32.mrf.mxu0
        %v742 = vadd.f32 %v373, %v741
        %v743 = vpop.f32.mrf.mxu0
        %v744 = vadd.f32 %v377, %v743
        %745 = vmatprep.mubr.bf16.mxu0 %v648
        %746 = vmatmul.mubr.bf16.gmra.mxu0 %v296
        %v747 = vpop.f32.mrf.mxu0
        %v748 = vadd.f32 %v373, %v747
        %v749 = vpop.f32.mrf.mxu0
        %v750 = vadd.f32 %v377, %v749
        %v751 = vpop.f32.mrf.mxu0
        %v752 = vadd.f32 %v373, %v751
        %v753 = vpop.f32.mrf.mxu0
        %v754 = vadd.f32 %v377, %v753
        %755 = vmatprep.mubr.bf16.mxu0 %v651
        %756 = vmatmul.mubr.bf16.gmra.mxu0 %v298
        %v757 = vpop.f32.mrf.mxu0
        %v758 = vadd.f32 %v373, %v757
        %v759 = vpop.f32.mrf.mxu0
        %v760 = vadd.f32 %v377, %v759
        %v761 = vpop.f32.mrf.mxu0
        %v762 = vadd.f32 %v373, %v761
        %v763 = vpop.f32.mrf.mxu0
        %v764 = vadd.f32 %v377, %v763
        %765 = vmatprep.mubr.bf16.mxu0 %v654
        %766 = vmatmul.mubr.bf16.gmra.mxu0 %v300
        %v767 = vpop.f32.mrf.mxu0
        %v768 = vadd.f32 %v373, %v767
        %v769 = vpop.f32.mrf.mxu0
        %v770 = vadd.f32 %v377, %v769
        %v771 = vpop.f32.mrf.mxu0
        %v772 = vadd.f32 %v373, %v771
        %v773 = vpop.f32.mrf.mxu0
        %v774 = vadd.f32 %v377, %v773
        %775 = vmatprep.mubr.bf16.mxu0 %v657
        %776 = vmatmul.mubr.bf16.gmra.mxu0 %v302
        %v777 = vpop.f32.mrf.mxu0
        %v778 = vadd.f32 %v373, %v777
        %v779 = vpop.f32.mrf.mxu0
        %v780 = vadd.f32 %v377, %v779
        %v781 = vpop.f32.mrf.mxu0
        %v782 = vadd.f32 %v373, %v781
        %v783 = vpop.f32.mrf.mxu0
        %v784 = vadd.f32 %v377, %v783
        %785 = vmatprep.mubr.bf16.mxu0 %v660
        %786 = vmatmul.mubr.bf16.gmra.mxu0 %v304
        %v787 = vpop.f32.mrf.mxu0
        %v788 = vadd.f32 %v373, %v787
        %v789 = vpop.f32.mrf.mxu0
        %v790 = vadd.f32 %v377, %v789
        %v791 = vpop.f32.mrf.mxu0
        %v792 = vadd.f32 %v373, %v791
        %v793 = vpop.f32.mrf.mxu0
        %v794 = vadd.f32 %v377, %v793
        %795 = vmatprep.mubr.bf16.mxu0 %v663
        %796 = vmatmul.mubr.bf16.gmra.mxu0 %v306
        %v797 = vpop.f32.mrf.mxu0
        %v798 = vadd.f32 %v373, %v797
        %v799 = vpop.f32.mrf.mxu0
        %v800 = vadd.f32 %v377, %v799
        %v801 = vpop.f32.mrf.mxu0
        %v802 = vadd.f32 %v373, %v801
        %v803 = vpop.f32.mrf.mxu0
        %v804 = vadd.f32 %v377, %v803
        %805 = vmatprep.mubr.bf16.mxu0 %v666
        %806 = vmatmul.mubr.bf16.gmra.mxu0 %v308
        %v807 = vpop.f32.mrf.mxu0
        %v808 = vadd.f32 %v373, %v807
        %v809 = vpop.f32.mrf.mxu0
        %v810 = vadd.f32 %v377, %v809
        %v811 = vpop.f32.mrf.mxu0
        %v812 = vadd.f32 %v373, %v811
        %v813 = vpop.f32.mrf.mxu0
        %v814 = vadd.f32 %v377, %v813
        %815 = vmatprep.mubr.bf16.mxu0 %v669
        %816 = vmatmul.mubr.bf16.gmra.mxu0 %v310
        %v817 = vpop.f32.mrf.mxu0
        %v818 = vadd.f32 %v373, %v817
        %v819 = vpop.f32.mrf.mxu0
        %v820 = vadd.f32 %v377, %v819
        %v821 = vpop.f32.mrf.mxu0
        %v822 = vadd.f32 %v373, %v821
        %v823 = vpop.f32.mrf.mxu0
        %v824 = vadd.f32 %v377, %v823
        %825 = vmatprep.mubr.bf16.mxu0 %v672
        %826 = vmatmul.mubr.bf16.gmra.mxu0 %v312
        %v827 = vpop.f32.mrf.mxu0
        %v828 = vadd.f32 %v373, %v827
        %v829 = vpop.f32.mrf.mxu0
        %v830 = vadd.f32 %v377, %v829
        %v831 = vpop.f32.mrf.mxu0
        %v832 = vadd.f32 %v373, %v831
        %v833 = vpop.f32.mrf.mxu0
        %v834 = vadd.f32 %v377, %v833
        %835 = vmatprep.mubr.bf16.mxu0 %v675
        %836 = vmatmul.mubr.bf16.gmra.mxu0 %v314
        %v837 = vpop.f32.mrf.mxu0
        %v838 = vadd.f32 %v373, %v837
        %v839 = vpop.f32.mrf.mxu0
        %v840 = vadd.f32 %v377, %v839
        %v841 = vpop.f32.mrf.mxu0
        %v842 = vadd.f32 %v373, %v841
        %v843 = vpop.f32.mrf.mxu0
        %v844 = vadd.f32 %v377, %v843
        %845 = vmatprep.mubr.bf16.mxu0 %v678
        %846 = vmatmul.mubr.bf16.gmra.mxu0 %v316
        %v847 = vpop.f32.mrf.mxu0
        %v848 = vadd.f32 %v373, %v847
        %v849 = vpop.f32.mrf.mxu0
        %v850 = vadd.f32 %v377, %v849
        %v851 = vpop.f32.mrf.mxu0
        %v852 = vpop.f32.mrf.mxu0
        %853 = vdwg.mxu0
        %854 = vmatprep.subr.bf16.mxu0 %v571
        %855 = vmatpush1.bf16.msra.mxu0 %v570
        %856 = vmatprep.subr.bf16.mxu0 %v567
        %857 = vmatpush1.bf16.msra.mxu0 %v566
        %858 = vmatprep.subr.bf16.mxu0 %v563
        %859 = vmatpush1.bf16.msra.mxu0 %v562
        %860 = vmatprep.subr.bf16.mxu0 %v559
        %861 = vmatpush1.bf16.msra.mxu0 %v558
        %862 = vmatprep.subr.bf16.mxu0 %v555
        %863 = vmatpush1.bf16.msra.mxu0 %v554
        %864 = vmatprep.subr.bf16.mxu0 %v551
        %865 = vmatpush1.bf16.msra.mxu0 %v550
        %866 = vmatprep.subr.bf16.mxu0 %v547
        %867 = vmatpush1.bf16.msra.mxu0 %v546
        %868 = vmatprep.subr.bf16.mxu0 %v543
        %869 = vmatpush1.bf16.msra.mxu0 %v542
        %870 = vmatprep.subr.bf16.mxu0 0
        %871 = vmatpush2.bf16.msra.mxu0 0
        %872 = vmatprep.subr.bf16.mxu0 0
        %873 = vmatpush2.bf16.msra.mxu0 0
        %874 = vmatprep.subr.bf16.mxu0 0
        %875 = vmatpush2.bf16.msra.mxu0 0
        %876 = vmatprep.subr.bf16.mxu0 %v691
        %877 = vmatpush2.bf16.msra.mxu0 %v688
        %878 = vmatprep.subr.bf16.mxu0 %v587
        %879 = vmatpush2.bf16.msra.mxu0 %v586
        %880 = vmatprep.subr.bf16.mxu0 %v583
        %881 = vmatpush2.bf16.msra.mxu0 %v582
        %882 = vmatprep.subr.bf16.mxu0 %v579
        %883 = vmatpush2.bf16.msra.mxu0 %v578
        %884 = vmatprep.subr.bf16.mxu0 %v575
        %885 = vmatpush2.bf16.msra.mxu0 %v574
        %886 = vmatprep.mubr.bf16.mxu0 %v642
        %887 = vmatmul.mubr.bf16.gmra.mxu0 %v292
        %v888 = vpop.f32.mrf.mxu0
        %v889 = vadd.f32 %v381, %v888
        %v890 = vpop.f32.mrf.mxu0
        %v891 = vadd.f32 %v385, %v890
        %v892 = vpop.f32.mrf.mxu0
        %v893 = vadd.f32 %v381, %v892
        %v894 = vpop.f32.mrf.mxu0
        %v895 = vadd.f32 %v385, %v894
        %896 = vmatprep.mubr.bf16.mxu0 %v645
        %897 = vmatmul.mubr.bf16.gmra.mxu0 %v294
        %v898 = vpop.f32.mrf.mxu0
        %v899 = vadd.f32 %v381, %v898
        %v900 = vpop.f32.mrf.mxu0
        %v901 = vadd.f32 %v385, %v900
        %v902 = vpop.f32.mrf.mxu0
        %v903 = vadd.f32 %v381, %v902
        %v904 = vpop.f32.mrf.mxu0
        %v905 = vadd.f32 %v385, %v904
        %906 = vmatprep.mubr.bf16.mxu0 %v648
        %907 = vmatmul.mubr.bf16.gmra.mxu0 %v296
        %v908 = vpop.f32.mrf.mxu0
        %v909 = vadd.f32 %v381, %v908
        %v910 = vpop.f32.mrf.mxu0
        %v911 = vadd.f32 %v385, %v910
        %v912 = vpop.f32.mrf.mxu0
        %v913 = vadd.f32 %v381, %v912
        %v914 = vpop.f32.mrf.mxu0
        %v915 = vadd.f32 %v385, %v914
        %916 = vmatprep.mubr.bf16.mxu0 %v651
        %917 = vmatmul.mubr.bf16.gmra.mxu0 %v298
        %v918 = vpop.f32.mrf.mxu0
        %v919 = vadd.f32 %v381, %v918
        %v920 = vpop.f32.mrf.mxu0
        %v921 = vadd.f32 %v385, %v920
        %v922 = vpop.f32.mrf.mxu0
        %v923 = vadd.f32 %v381, %v922
        %v924 = vpop.f32.mrf.mxu0
        %v925 = vadd.f32 %v385, %v924
        %926 = vmatprep.mubr.bf16.mxu0 %v654
        %927 = vmatmul.mubr.bf16.gmra.mxu0 %v300
        %v928 = vpop.f32.mrf.mxu0
        %v929 = vadd.f32 %v381, %v928
        %v930 = vpop.f32.mrf.mxu0
        %v931 = vadd.f32 %v385, %v930
        %v932 = vpop.f32.mrf.mxu0
        %v933 = vadd.f32 %v381, %v932
        %v934 = vpop.f32.mrf.mxu0
        %v935 = vadd.f32 %v385, %v934
        %936 = vmatprep.mubr.bf16.mxu0 %v657
        %937 = vmatmul.mubr.bf16.gmra.mxu0 %v302
        %v938 = vpop.f32.mrf.mxu0
        %v939 = vadd.f32 %v381, %v938
        %v940 = vpop.f32.mrf.mxu0
        %v941 = vadd.f32 %v385, %v940
        %v942 = vpop.f32.mrf.mxu0
        %v943 = vadd.f32 %v381, %v942
        %v944 = vpop.f32.mrf.mxu0
        %v945 = vadd.f32 %v385, %v944
        %946 = vmatprep.mubr.bf16.mxu0 %v660
        %947 = vmatmul.mubr.bf16.gmra.mxu0 %v304
        %v948 = vpop.f32.mrf.mxu0
        %v949 = vadd.f32 %v381, %v948
        %v950 = vpop.f32.mrf.mxu0
        %v951 = vadd.f32 %v385, %v950
        %v952 = vpop.f32.mrf.mxu0
        %v953 = vadd.f32 %v381, %v952
        %v954 = vpop.f32.mrf.mxu0
        %v955 = vadd.f32 %v385, %v954
        %956 = vmatprep.mubr.bf16.mxu0 %v663
        %957 = vmatmul.mubr.bf16.gmra.mxu0 %v306
        %v958 = vpop.f32.mrf.mxu0
        %v959 = vadd.f32 %v381, %v958
        %v960 = vpop.f32.mrf.mxu0
        %v961 = vadd.f32 %v385, %v960
        %v962 = vpop.f32.mrf.mxu0
        %v963 = vadd.f32 %v381, %v962
        %v964 = vpop.f32.mrf.mxu0
        %v965 = vadd.f32 %v385, %v964
        %966 = vmatprep.mubr.bf16.mxu0 %v666
        %967 = vmatmul.mubr.bf16.gmra.mxu0 %v308
        %v968 = vpop.f32.mrf.mxu0
        %v969 = vadd.f32 %v381, %v968
        %v970 = vpop.f32.mrf.mxu0
        %v971 = vadd.f32 %v385, %v970
        %v972 = vpop.f32.mrf.mxu0
        %v973 = vadd.f32 %v381, %v972
        %v974 = vpop.f32.mrf.mxu0
        %v975 = vadd.f32 %v385, %v974
        %976 = vmatprep.mubr.bf16.mxu0 %v669
        %977 = vmatmul.mubr.bf16.gmra.mxu0 %v310
        %v978 = vpop.f32.mrf.mxu0
        %v979 = vadd.f32 %v381, %v978
        %v980 = vpop.f32.mrf.mxu0
        %v981 = vadd.f32 %v385, %v980
        %v982 = vpop.f32.mrf.mxu0
        %v983 = vadd.f32 %v381, %v982
        %v984 = vpop.f32.mrf.mxu0
        %v985 = vadd.f32 %v385, %v984
        %986 = vmatprep.mubr.bf16.mxu0 %v672
        %987 = vmatmul.mubr.bf16.gmra.mxu0 %v312
        %v988 = vpop.f32.mrf.mxu0
        %v989 = vadd.f32 %v381, %v988
        %v990 = vpop.f32.mrf.mxu0
        %v991 = vadd.f32 %v385, %v990
        %v992 = vpop.f32.mrf.mxu0
        %v993 = vadd.f32 %v381, %v992
        %v994 = vpop.f32.mrf.mxu0
        %v995 = vadd.f32 %v385, %v994
        %996 = vmatprep.mubr.bf16.mxu0 %v675
        %997 = vmatmul.mubr.bf16.gmra.mxu0 %v314
        %v998 = vpop.f32.mrf.mxu0
        %v999 = vadd.f32 %v381, %v998
        %v1000 = vpop.f32.mrf.mxu0
        %v1001 = vadd.f32 %v385, %v1000
        %v1002 = vpop.f32.mrf.mxu0
        %v1003 = vadd.f32 %v381, %v1002
        %v1004 = vpop.f32.mrf.mxu0
        %v1005 = vadd.f32 %v385, %v1004
        %1006 = vmatprep.mubr.bf16.mxu0 %v678
        %1007 = vmatmul.mubr.bf16.gmra.mxu0 %v316
        %v1008 = vpop.f32.mrf.mxu0
        %v1009 = vadd.f32 %v381, %v1008
        %v1010 = vpop.f32.mrf.mxu0
        %v1011 = vadd.f32 %v385, %v1010
        %v1012 = vpop.f32.mrf.mxu0
        %v1013 = vpop.f32.mrf.mxu0
        %1014 = vdwg.mxu0
        %v1015 = vxor.u32 %v728, 2147483648
        %v1016 = vxor.u32 %v730, 2147483648
        %v1017 = vxor.u32 %v732, 2147483648
        %v1018 = vxor.u32 %v734, 2147483648
        %v1019 = vxor.u32 %v738, 2147483648
        %v1020 = vxor.u32 %v740, 2147483648
        %v1021 = vxor.u32 %v742, 2147483648
        %v1022 = vxor.u32 %v744, 2147483648
        %v1023 = vxor.u32 %v748, 2147483648
        %v1024 = vxor.u32 %v750, 2147483648
        %v1025 = vxor.u32 %v752, 2147483648
        %v1026 = vxor.u32 %v754, 2147483648
        %v1027 = vxor.u32 %v758, 2147483648
        %v1028 = vxor.u32 %v760, 2147483648
        %v1029 = vxor.u32 %v762, 2147483648
        %v1030 = vxor.u32 %v764, 2147483648
        %v1031 = vxor.u32 %v768, 2147483648
        %v1032 = vxor.u32 %v770, 2147483648
        %v1033 = vxor.u32 %v772, 2147483648
        %v1034 = vxor.u32 %v774, 2147483648
        %v1035 = vxor.u32 %v778, 2147483648
        %v1036 = vxor.u32 %v780, 2147483648
        %v1037 = vxor.u32 %v782, 2147483648
        %v1038 = vxor.u32 %v784, 2147483648
        %v1039 = vxor.u32 %v788, 2147483648
        %v1040 = vxor.u32 %v790, 2147483648
        %v1041 = vxor.u32 %v792, 2147483648
        %v1042 = vxor.u32 %v794, 2147483648
        %v1043 = vxor.u32 %v798, 2147483648
        %v1044 = vxor.u32 %v800, 2147483648
        %v1045 = vxor.u32 %v802, 2147483648
        %v1046 = vxor.u32 %v804, 2147483648
        %v1047 = vxor.u32 %v808, 2147483648
        %v1048 = vxor.u32 %v810, 2147483648
        %v1049 = vxor.u32 %v812, 2147483648
        %v1050 = vxor.u32 %v814, 2147483648
        %v1051 = vxor.u32 %v818, 2147483648
        %v1052 = vxor.u32 %v820, 2147483648
        %v1053 = vxor.u32 %v822, 2147483648
        %v1054 = vxor.u32 %v824, 2147483648
        %v1055 = vxor.u32 %v828, 2147483648
        %v1056 = vxor.u32 %v830, 2147483648
        %v1057 = vxor.u32 %v832, 2147483648
        %v1058 = vxor.u32 %v834, 2147483648
        %v1059 = vxor.u32 %v838, 2147483648
        %v1060 = vxor.u32 %v840, 2147483648
        %v1061 = vxor.u32 %v842, 2147483648
        %v1062 = vxor.u32 %v844, 2147483648
        %v1063 = vxor.u32 %v848, 2147483648
        %v1064 = vxor.u32 %v850, 2147483648
        %v1065 = vmul.f32 %v1015, 1.442695
        %v1066 = vpow.pop %v1065
        %v1067 = vmul.f32 %v1016, 1.442695
        %v1068 = vpow.pop %v1067
        %v1069 = vmul.f32 %v1017, 1.442695
        %v1070 = vpow.pop %v1069
        %v1071 = vmul.f32 %v1018, 1.442695
        %v1072 = vpow.pop %v1071
        %v1073 = vmul.f32 %v1019, 1.442695
        %v1074 = vpow.pop %v1073
        %v1075 = vmul.f32 %v1020, 1.442695
        %v1076 = vpow.pop %v1075
        %v1077 = vmul.f32 %v1021, 1.442695
        %v1078 = vpow.pop %v1077
        %v1079 = vmul.f32 %v1022, 1.442695
        %v1080 = vpow.pop %v1079
        %v1081 = vmul.f32 %v1023, 1.442695
        %v1082 = vpow.pop %v1081
        %v1083 = vmul.f32 %v1024, 1.442695
        %v1084 = vpow.pop %v1083
        %v1085 = vmul.f32 %v1025, 1.442695
        %v1086 = vpow.pop %v1085
        %v1087 = vmul.f32 %v1026, 1.442695
        %v1088 = vpow.pop %v1087
        %v1089 = vmul.f32 %v1027, 1.442695
        %v1090 = vpow.pop %v1089
        %v1091 = vmul.f32 %v1028, 1.442695
        %v1092 = vpow.pop %v1091
        %v1093 = vmul.f32 %v1029, 1.442695
        %v1094 = vpow.pop %v1093
        %v1095 = vmul.f32 %v1030, 1.442695
        %v1096 = vpow.pop %v1095
        %v1097 = vmul.f32 %v1031, 1.442695
        %v1098 = vpow.pop %v1097
        %v1099 = vmul.f32 %v1032, 1.442695
        %v1100 = vpow.pop %v1099
        %v1101 = vmul.f32 %v1033, 1.442695
        %v1102 = vpow.pop %v1101
        %v1103 = vmul.f32 %v1034, 1.442695
        %v1104 = vpow.pop %v1103
        %v1105 = vmul.f32 %v1035, 1.442695
        %v1106 = vpow.pop %v1105
        %v1107 = vmul.f32 %v1036, 1.442695
        %v1108 = vpow.pop %v1107
        %v1109 = vmul.f32 %v1037, 1.442695
        %v1110 = vpow.pop %v1109
        %v1111 = vmul.f32 %v1038, 1.442695
        %v1112 = vpow.pop %v1111
        %v1113 = vmul.f32 %v1039, 1.442695
        %v1114 = vpow.pop %v1113
        %v1115 = vmul.f32 %v1040, 1.442695
        %v1116 = vpow.pop %v1115
        %v1117 = vmul.f32 %v1041, 1.442695
        %v1118 = vpow.pop %v1117
        %v1119 = vmul.f32 %v1042, 1.442695
        %v1120 = vpow.pop %v1119
        %v1121 = vmul.f32 %v1043, 1.442695
        %v1122 = vpow.pop %v1121
        %v1123 = vmul.f32 %v1044, 1.442695
        %v1124 = vpow.pop %v1123
        %v1125 = vmul.f32 %v1045, 1.442695
        %v1126 = vpow.pop %v1125
        %v1127 = vmul.f32 %v1046, 1.442695
        %v1128 = vpow.pop %v1127
        %v1129 = vmul.f32 %v1047, 1.442695
        %v1130 = vpow.pop %v1129
        %v1131 = vmul.f32 %v1048, 1.442695
        %v1132 = vpow.pop %v1131
        %v1133 = vmul.f32 %v1049, 1.442695
        %v1134 = vpow.pop %v1133
        %v1135 = vmul.f32 %v1050, 1.442695
        %v1136 = vpow.pop %v1135
        %v1137 = vmul.f32 %v1051, 1.442695
        %v1138 = vpow.pop %v1137
        %v1139 = vmul.f32 %v1052, 1.442695
        %v1140 = vpow.pop %v1139
        %v1141 = vmul.f32 %v1053, 1.442695
        %v1142 = vpow.pop %v1141
        %v1143 = vmul.f32 %v1054, 1.442695
        %v1144 = vpow.pop %v1143
        %v1145 = vmul.f32 %v1055, 1.442695
        %v1146 = vpow.pop %v1145
        %v1147 = vmul.f32 %v1056, 1.442695
        %v1148 = vpow.pop %v1147
        %v1149 = vmul.f32 %v1057, 1.442695
        %v1150 = vpow.pop %v1149
        %v1151 = vmul.f32 %v1058, 1.442695
        %v1152 = vpow.pop %v1151
        %v1153 = vmul.f32 %v1059, 1.442695
        %v1154 = vpow.pop %v1153
        %v1155 = vmul.f32 %v1060, 1.442695
        %v1156 = vpow.pop %v1155
        %v1157 = vmul.f32 %v1061, 1.442695
        %v1158 = vpow.pop %v1157
        %v1159 = vmul.f32 %v1062, 1.442695
        %v1160 = vpow.pop %v1159
        %v1161 = vmul.f32 %v1063, 1.442695
        %v1162 = vpow.pop %v1161
        %v1163 = vmul.f32 %v1064, 1.442695
        %v1164 = vpow.pop %v1163
        %v1165 = vadd.f32 %v1066, 1.0
        %v1166 = vadd.f32 %v1068, 1.0
        %v1167 = vadd.f32 %v1070, 1.0
        %v1168 = vadd.f32 %v1072, 1.0
        %v1169 = vadd.f32 %v1074, 1.0
        %v1170 = vadd.f32 %v1076, 1.0
        %v1171 = vadd.f32 %v1078, 1.0
        %v1172 = vadd.f32 %v1080, 1.0
        %v1173 = vadd.f32 %v1082, 1.0
        %v1174 = vadd.f32 %v1084, 1.0
        %v1175 = vadd.f32 %v1086, 1.0
        %v1176 = vadd.f32 %v1088, 1.0
        %v1177 = vadd.f32 %v1090, 1.0
        %v1178 = vadd.f32 %v1092, 1.0
        %v1179 = vadd.f32 %v1094, 1.0
        %v1180 = vadd.f32 %v1096, 1.0
        %v1181 = vadd.f32 %v1098, 1.0
        %v1182 = vadd.f32 %v1100, 1.0
        %v1183 = vadd.f32 %v1102, 1.0
        %v1184 = vadd.f32 %v1104, 1.0
        %v1185 = vadd.f32 %v1106, 1.0
        %v1186 = vadd.f32 %v1108, 1.0
        %v1187 = vadd.f32 %v1110, 1.0
        %v1188 = vadd.f32 %v1112, 1.0
        %v1189 = vadd.f32 %v1114, 1.0
        %v1190 = vadd.f32 %v1116, 1.0
        %v1191 = vadd.f32 %v1118, 1.0
        %v1192 = vadd.f32 %v1120, 1.0
        %v1193 = vadd.f32 %v1122, 1.0
        %v1194 = vadd.f32 %v1124, 1.0
        %v1195 = vadd.f32 %v1126, 1.0
        %v1196 = vadd.f32 %v1128, 1.0
        %v1197 = vadd.f32 %v1130, 1.0
        %v1198 = vadd.f32 %v1132, 1.0
        %v1199 = vadd.f32 %v1134, 1.0
        %v1200 = vadd.f32 %v1136, 1.0
        %v1201 = vadd.f32 %v1138, 1.0
        %v1202 = vadd.f32 %v1140, 1.0
        %v1203 = vadd.f32 %v1142, 1.0
        %v1204 = vadd.f32 %v1144, 1.0
        %v1205 = vadd.f32 %v1146, 1.0
        %v1206 = vadd.f32 %v1148, 1.0
        %v1207 = vadd.f32 %v1150, 1.0
        %v1208 = vadd.f32 %v1152, 1.0
        %v1209 = vadd.f32 %v1154, 1.0
        %v1210 = vadd.f32 %v1156, 1.0
        %v1211 = vadd.f32 %v1158, 1.0
        %v1212 = vadd.f32 %v1160, 1.0
        %v1213 = vadd.f32 %v1162, 1.0
        %v1214 = vadd.f32 %v1164, 1.0
        %v1215 = vrcp.pop %v1165
        %v1216 = vmul.f32 1.0, %v1215
        %v1217 = vrcp.pop %v1166
        %v1218 = vmul.f32 1.0, %v1217
        %v1219 = vrcp.pop %v1167
        %v1220 = vmul.f32 1.0, %v1219
        %v1221 = vrcp.pop %v1168
        %v1222 = vmul.f32 1.0, %v1221
        %v1223 = vrcp.pop %v1169
        %v1224 = vmul.f32 1.0, %v1223
        %v1225 = vrcp.pop %v1170
        %v1226 = vmul.f32 1.0, %v1225
        %v1227 = vrcp.pop %v1171
        %v1228 = vmul.f32 1.0, %v1227
        %v1229 = vrcp.pop %v1172
        %v1230 = vmul.f32 1.0, %v1229
        %v1231 = vrcp.pop %v1173
        %v1232 = vmul.f32 1.0, %v1231
        %v1233 = vrcp.pop %v1174
        %v1234 = vmul.f32 1.0, %v1233
        %v1235 = vrcp.pop %v1175
        %v1236 = vmul.f32 1.0, %v1235
        %v1237 = vrcp.pop %v1176
        %v1238 = vmul.f32 1.0, %v1237
        %v1239 = vrcp.pop %v1177
        %v1240 = vmul.f32 1.0, %v1239
        %v1241 = vrcp.pop %v1178
        %v1242 = vmul.f32 1.0, %v1241
        %v1243 = vrcp.pop %v1179
        %v1244 = vmul.f32 1.0, %v1243
        %v1245 = vrcp.pop %v1180
        %v1246 = vmul.f32 1.0, %v1245
        %v1247 = vrcp.pop %v1181
        %v1248 = vmul.f32 1.0, %v1247
        %v1249 = vrcp.pop %v1182
        %v1250 = vmul.f32 1.0, %v1249
        %v1251 = vrcp.pop %v1183
        %v1252 = vmul.f32 1.0, %v1251
        %v1253 = vrcp.pop %v1184
        %v1254 = vmul.f32 1.0, %v1253
        %v1255 = vrcp.pop %v1185
        %v1256 = vmul.f32 1.0, %v1255
        %v1257 = vrcp.pop %v1186
        %v1258 = vmul.f32 1.0, %v1257
        %v1259 = vrcp.pop %v1187
        %v1260 = vmul.f32 1.0, %v1259
        %v1261 = vrcp.pop %v1188
        %v1262 = vmul.f32 1.0, %v1261
        %v1263 = vrcp.pop %v1189
        %v1264 = vmul.f32 1.0, %v1263
        %v1265 = vrcp.pop %v1190
        %v1266 = vmul.f32 1.0, %v1265
        %v1267 = vrcp.pop %v1191
        %v1268 = vmul.f32 1.0, %v1267
        %v1269 = vrcp.pop %v1192
        %v1270 = vmul.f32 1.0, %v1269
        %v1271 = vrcp.pop %v1193
        %v1272 = vmul.f32 1.0, %v1271
        %v1273 = vrcp.pop %v1194
        %v1274 = vmul.f32 1.0, %v1273
        %v1275 = vrcp.pop %v1195
        %v1276 = vmul.f32 1.0, %v1275
        %v1277 = vrcp.pop %v1196
        %v1278 = vmul.f32 1.0, %v1277
        %v1279 = vrcp.pop %v1197
        %v1280 = vmul.f32 1.0, %v1279
        %v1281 = vrcp.pop %v1198
        %v1282 = vmul.f32 1.0, %v1281
        %v1283 = vrcp.pop %v1199
        %v1284 = vmul.f32 1.0, %v1283
        %v1285 = vrcp.pop %v1200
        %v1286 = vmul.f32 1.0, %v1285
        %v1287 = vrcp.pop %v1201
        %v1288 = vmul.f32 1.0, %v1287
        %v1289 = vrcp.pop %v1202
        %v1290 = vmul.f32 1.0, %v1289
        %v1291 = vrcp.pop %v1203
        %v1292 = vmul.f32 1.0, %v1291
        %v1293 = vrcp.pop %v1204
        %v1294 = vmul.f32 1.0, %v1293
        %v1295 = vrcp.pop %v1205
        %v1296 = vmul.f32 1.0, %v1295
        %v1297 = vrcp.pop %v1206
        %v1298 = vmul.f32 1.0, %v1297
        %v1299 = vrcp.pop %v1207
        %v1300 = vmul.f32 1.0, %v1299
        %v1301 = vrcp.pop %v1208
        %v1302 = vmul.f32 1.0, %v1301
        %v1303 = vrcp.pop %v1209
        %v1304 = vmul.f32 1.0, %v1303
        %v1305 = vrcp.pop %v1210
        %v1306 = vmul.f32 1.0, %v1305
        %v1307 = vrcp.pop %v1211
        %v1308 = vmul.f32 1.0, %v1307
        %v1309 = vrcp.pop %v1212
        %v1310 = vmul.f32 1.0, %v1309
        %v1311 = vrcp.pop %v1213
        %v1312 = vmul.f32 1.0, %v1311
        %v1313 = vrcp.pop %v1214
        %v1314 = vmul.f32 1.0, %v1313
        %v1315 = vtanh.pop %v889
        %v1316 = vtanh.pop %v891
        %v1317 = vtanh.pop %v893
        %v1318 = vtanh.pop %v895
        %v1319 = vtanh.pop %v899
        %v1320 = vtanh.pop %v901
        %v1321 = vtanh.pop %v903
        %v1322 = vtanh.pop %v905
        %v1323 = vtanh.pop %v909
        %v1324 = vtanh.pop %v911
        %v1325 = vtanh.pop %v913
        %v1326 = vtanh.pop %v915
        %v1327 = vtanh.pop %v919
        %v1328 = vtanh.pop %v921
        %v1329 = vtanh.pop %v923
        %v1330 = vtanh.pop %v925
        %v1331 = vtanh.pop %v929
        %v1332 = vtanh.pop %v931
        %v1333 = vtanh.pop %v933
        %v1334 = vtanh.pop %v935
        %v1335 = vtanh.pop %v939
        %v1336 = vtanh.pop %v941
        %v1337 = vtanh.pop %v943
        %v1338 = vtanh.pop %v945
        %v1339 = vtanh.pop %v949
        %v1340 = vtanh.pop %v951
        %v1341 = vtanh.pop %v953
        %v1342 = vtanh.pop %v955
        %v1343 = vtanh.pop %v959
        %v1344 = vtanh.pop %v961
        %v1345 = vtanh.pop %v963
        %v1346 = vtanh.pop %v965
        %v1347 = vtanh.pop %v969
        %v1348 = vtanh.pop %v971
        %v1349 = vtanh.pop %v973
        %v1350 = vtanh.pop %v975
        %v1351 = vtanh.pop %v979
        %v1352 = vtanh.pop %v981
        %v1353 = vtanh.pop %v983
        %v1354 = vtanh.pop %v985
        %v1355 = vtanh.pop %v989
        %v1356 = vtanh.pop %v991
        %v1357 = vtanh.pop %v993
        %v1358 = vtanh.pop %v995
        %v1359 = vtanh.pop %v999
        %v1360 = vtanh.pop %v1001
        %v1361 = vtanh.pop %v1003
        %v1362 = vtanh.pop %v1005
        %v1363 = vtanh.pop %v1009
        %v1364 = vtanh.pop %v1011
        %v1365 = vld [vmem:[%s238] sm:$0xff]
        %v1366 = vld [vmem:[%s238 + $0x8] sm:$0xff]
        %v1367 = vld [vmem:[%s238 + $0x10] sm:$0xff]
        %v1368 = vld [vmem:[%s238 + $0x18] sm:$0xff]
        %v1369 = vld [vmem:[%s238 + $0x20] sm:$0xff]
        %v1370 = vld [vmem:[%s238 + $0x28] sm:$0xff]
        %v1371 = vld [vmem:[%s238 + $0x30] sm:$0xff]
        %v1372 = vld [vmem:[%s238 + $0x38] sm:$0xff]
        %v1373 = vld [vmem:[%s238 + $0x40] sm:$0xff]
        %v1374 = vld [vmem:[%s238 + $0x48] sm:$0xff]
        %v1375 = vld [vmem:[%s238 + $0x50] sm:$0xff]
        %v1376 = vld [vmem:[%s238 + $0x58] sm:$0xff]
        %v1377 = vld [vmem:[%s238 + $0x60] sm:$0xff]
        %v1378 = vld [vmem:[%s238 + $0x68] sm:$0xff]
        %v1379 = vld [vmem:[%s238 + $0x70] sm:$0xff]
        %v1380 = vld [vmem:[%s238 + $0x78] sm:$0xff]
        %v1381 = vld [vmem:[%s238 + $0x80] sm:$0xff]
        %v1382 = vld [vmem:[%s238 + $0x88] sm:$0xff]
        %v1383 = vld [vmem:[%s238 + $0x90] sm:$0xff]
        %v1384 = vld [vmem:[%s238 + $0x98] sm:$0xff]
        %v1385 = vld [vmem:[%s238 + $0xa0] sm:$0xff]
        %v1386 = vld [vmem:[%s238 + $0xa8] sm:$0xff]
        %v1387 = vld [vmem:[%s238 + $0xb0] sm:$0xff]
        %v1388 = vld [vmem:[%s238 + $0xb8] sm:$0xff]
        %v1389 = vld [vmem:[%s238 + $0xc0] sm:$0xff]
        %1391 = vset.pattern.permute.xlu0 0
        %1392 = vperm.xlu0 %1391, %v1365
        %v1393 = vpop.permute.xlu0 %1392
        %1396 = vset.pattern.permute.xlu0 0
        %1397 = vperm.xlu0 %1396, %v1366
        %v1398 = vpop.permute.xlu0 %1397
        %1401 = vset.pattern.permute.xlu0 0
        %1402 = vperm.xlu0 %1401, %v1367
        %v1403 = vpop.permute.xlu0 %1402
        %1406 = vset.pattern.permute.xlu0 0
        %1407 = vperm.xlu0 %1406, %v1368
        %v1408 = vpop.permute.xlu0 %1407
        %1411 = vset.pattern.permute.xlu0 0
        %1412 = vperm.xlu0 %1411, %v1369
        %v1413 = vpop.permute.xlu0 %1412
        %1416 = vset.pattern.permute.xlu0 0
        %1417 = vperm.xlu0 %1416, %v1370
        %v1418 = vpop.permute.xlu0 %1417
        %1421 = vset.pattern.permute.xlu0 0
        %1422 = vperm.xlu0 %1421, %v1371
        %v1423 = vpop.permute.xlu0 %1422
        %1426 = vset.pattern.permute.xlu0 0
        %1427 = vperm.xlu0 %1426, %v1372
        %v1428 = vpop.permute.xlu0 %1427
        %1431 = vset.pattern.permute.xlu0 0
        %1432 = vperm.xlu0 %1431, %v1373
        %v1433 = vpop.permute.xlu0 %1432
        %1436 = vset.pattern.permute.xlu0 0
        %1437 = vperm.xlu0 %1436, %v1374
        %v1438 = vpop.permute.xlu0 %1437
        %1441 = vset.pattern.permute.xlu0 0
        %1442 = vperm.xlu0 %1441, %v1375
        %v1443 = vpop.permute.xlu0 %1442
        %1446 = vset.pattern.permute.xlu0 0
        %1447 = vperm.xlu0 %1446, %v1376
        %v1448 = vpop.permute.xlu0 %1447
        %1451 = vset.pattern.permute.xlu0 0
        %1452 = vperm.xlu0 %1451, %v1377
        %v1453 = vpop.permute.xlu0 %1452
        %1456 = vset.pattern.permute.xlu0 0
        %1457 = vperm.xlu0 %1456, %v1378
        %v1458 = vpop.permute.xlu0 %1457
        %1461 = vset.pattern.permute.xlu0 0
        %1462 = vperm.xlu0 %1461, %v1379
        %v1463 = vpop.permute.xlu0 %1462
        %1466 = vset.pattern.permute.xlu0 0
        %1467 = vperm.xlu0 %1466, %v1380
        %v1468 = vpop.permute.xlu0 %1467
        %1471 = vset.pattern.permute.xlu0 0
        %1472 = vperm.xlu0 %1471, %v1381
        %v1473 = vpop.permute.xlu0 %1472
        %1476 = vset.pattern.permute.xlu0 0
        %1477 = vperm.xlu0 %1476, %v1382
        %v1478 = vpop.permute.xlu0 %1477
        %1481 = vset.pattern.permute.xlu0 0
        %1482 = vperm.xlu0 %1481, %v1383
        %v1483 = vpop.permute.xlu0 %1482
        %1486 = vset.pattern.permute.xlu0 0
        %1487 = vperm.xlu0 %1486, %v1384
        %v1488 = vpop.permute.xlu0 %1487
        %1491 = vset.pattern.permute.xlu0 0
        %1492 = vperm.xlu0 %1491, %v1385
        %v1493 = vpop.permute.xlu0 %1492
        %1496 = vset.pattern.permute.xlu0 0
        %1497 = vperm.xlu0 %1496, %v1386
        %v1498 = vpop.permute.xlu0 %1497
        %1501 = vset.pattern.permute.xlu0 0
        %1502 = vperm.xlu0 %1501, %v1387
        %v1503 = vpop.permute.xlu0 %1502
        %1506 = vset.pattern.permute.xlu0 0
        %1507 = vperm.xlu0 %1506, %v1388
        %v1508 = vpop.permute.xlu0 %1507
        %1511 = vset.pattern.permute.xlu0 0
        %1512 = vperm.xlu0 %1511, %v1389
        %v1513 = vpop.permute.xlu0 %1512
        %v1515 = vmul.f32 %v1393, %v1216
        %v1516 = vmul.f32 %v1393, %v1218
        %v1517 = vmul.f32 %v1398, %v1220
        %v1518 = vmul.f32 %v1398, %v1222
        %v1519 = vmul.f32 %v1403, %v1224
        %v1520 = vmul.f32 %v1403, %v1226
        %v1521 = vmul.f32 %v1408, %v1228
        %v1522 = vmul.f32 %v1408, %v1230
        %v1523 = vmul.f32 %v1413, %v1232
        %v1524 = vmul.f32 %v1413, %v1234
        %v1525 = vmul.f32 %v1418, %v1236
        %v1526 = vmul.f32 %v1418, %v1238
        %v1527 = vmul.f32 %v1423, %v1240
        %v1528 = vmul.f32 %v1423, %v1242
        %v1529 = vmul.f32 %v1428, %v1244
        %v1530 = vmul.f32 %v1428, %v1246
        %v1531 = vmul.f32 %v1433, %v1248
        %v1532 = vmul.f32 %v1433, %v1250
        %v1533 = vmul.f32 %v1438, %v1252
        %v1534 = vmul.f32 %v1438, %v1254
        %v1535 = vmul.f32 %v1443, %v1256
        %v1536 = vmul.f32 %v1443, %v1258
        %v1537 = vmul.f32 %v1448, %v1260
        %v1538 = vmul.f32 %v1448, %v1262
        %v1539 = vmul.f32 %v1453, %v1264
        %v1540 = vmul.f32 %v1453, %v1266
        %v1541 = vmul.f32 %v1458, %v1268
        %v1542 = vmul.f32 %v1458, %v1270
        %v1543 = vmul.f32 %v1463, %v1272
        %v1544 = vmul.f32 %v1463, %v1274
        %v1545 = vmul.f32 %v1468, %v1276
        %v1546 = vmul.f32 %v1468, %v1278
        %v1547 = vmul.f32 %v1473, %v1280
        %v1548 = vmul.f32 %v1473, %v1282
        %v1549 = vmul.f32 %v1478, %v1284
        %v1550 = vmul.f32 %v1478, %v1286
        %v1551 = vmul.f32 %v1483, %v1288
        %v1552 = vmul.f32 %v1483, %v1290
        %v1553 = vmul.f32 %v1488, %v1292
        %v1554 = vmul.f32 %v1488, %v1294
        %v1555 = vmul.f32 %v1493, %v1296
        %v1556 = vmul.f32 %v1493, %v1298
        %v1557 = vmul.f32 %v1498, %v1300
        %v1558 = vmul.f32 %v1498, %v1302
        %v1559 = vmul.f32 %v1503, %v1304
        %v1560 = vmul.f32 %v1503, %v1306
        %v1561 = vmul.f32 %v1508, %v1308
        %v1562 = vmul.f32 %v1508, %v1310
        %v1563 = vmul.f32 %v1513, %v1312
        %v1564 = vmul.f32 %v1513, %v1314
        %v1565 = vmul.f32 %v1515, %v1315
        %v1566 = vmul.f32 %v1516, %v1316
        %v1567 = vmul.f32 %v1517, %v1317
        %v1568 = vmul.f32 %v1518, %v1318
        %v1569 = vmul.f32 %v1519, %v1319
        %v1570 = vmul.f32 %v1520, %v1320
        %v1571 = vmul.f32 %v1521, %v1321
        %v1572 = vmul.f32 %v1522, %v1322
        %v1573 = vmul.f32 %v1523, %v1323
        %v1574 = vmul.f32 %v1524, %v1324
        %v1575 = vmul.f32 %v1525, %v1325
        %v1576 = vmul.f32 %v1526, %v1326
        %v1577 = vmul.f32 %v1527, %v1327
        %v1578 = vmul.f32 %v1528, %v1328
        %v1579 = vmul.f32 %v1529, %v1329
        %v1580 = vmul.f32 %v1530, %v1330
        %v1581 = vmul.f32 %v1531, %v1331
        %v1582 = vmul.f32 %v1532, %v1332
        %v1583 = vmul.f32 %v1533, %v1333
        %v1584 = vmul.f32 %v1534, %v1334
        %v1585 = vmul.f32 %v1535, %v1335
        %v1586 = vmul.f32 %v1536, %v1336
        %v1587 = vmul.f32 %v1537, %v1337
        %v1588 = vmul.f32 %v1538, %v1338
        %v1589 = vmul.f32 %v1539, %v1339
        %v1590 = vmul.f32 %v1540, %v1340
        %v1591 = vmul.f32 %v1541, %v1341
        %v1592 = vmul.f32 %v1542, %v1342
        %v1593 = vmul.f32 %v1543, %v1343
        %v1594 = vmul.f32 %v1544, %v1344
        %v1595 = vmul.f32 %v1545, %v1345
        %v1596 = vmul.f32 %v1546, %v1346
        %v1597 = vmul.f32 %v1547, %v1347
        %v1598 = vmul.f32 %v1548, %v1348
        %v1599 = vmul.f32 %v1549, %v1349
        %v1600 = vmul.f32 %v1550, %v1350
        %v1601 = vmul.f32 %v1551, %v1351
        %v1602 = vmul.f32 %v1552, %v1352
        %v1603 = vmul.f32 %v1553, %v1353
        %v1604 = vmul.f32 %v1554, %v1354
        %v1605 = vmul.f32 %v1555, %v1355
        %v1606 = vmul.f32 %v1556, %v1356
        %v1607 = vmul.f32 %v1557, %v1357
        %v1608 = vmul.f32 %v1558, %v1358
        %v1609 = vmul.f32 %v1559, %v1359
        %v1610 = vmul.f32 %v1560, %v1360
        %v1611 = vmul.f32 %v1561, %v1361
        %v1612 = vmul.f32 %v1562, %v1362
        %v1613 = vmul.f32 %v1563, %v1363
        %v1614 = vmul.f32 %v1564, %v1364
        %1615 = vst [vmem:[%s232] sm:$0xff] %v1565
        %1616 = vst.msk [vmem:[%s232 + $0x8] sm:$0xff] %vm640, %v1566
        %1617 = vst [vmem:[%s232 + $0x10] sm:$0xff] %v1567
        %1618 = vst.msk [vmem:[%s232 + $0x18] sm:$0xff] %vm640, %v1568
        %1619 = vst [vmem:[%s232 + $0x20] sm:$0xff] %v1569
        %1620 = vst.msk [vmem:[%s232 + $0x28] sm:$0xff] %vm640, %v1570
        %1621 = vst [vmem:[%s232 + $0x30] sm:$0xff] %v1571
        %1622 = vst.msk [vmem:[%s232 + $0x38] sm:$0xff] %vm640, %v1572
        %1623 = vst [vmem:[%s232 + $0x40] sm:$0xff] %v1573
        %1624 = vst.msk [vmem:[%s232 + $0x48] sm:$0xff] %vm640, %v1574
        %1625 = vst [vmem:[%s232 + $0x50] sm:$0xff] %v1575
        %1626 = vst.msk [vmem:[%s232 + $0x58] sm:$0xff] %vm640, %v1576
        %1627 = vst [vmem:[%s232 + $0x60] sm:$0xff] %v1577
        %1628 = vst.msk [vmem:[%s232 + $0x68] sm:$0xff] %vm640, %v1578
        %1629 = vst [vmem:[%s232 + $0x70] sm:$0xff] %v1579
        %1630 = vst.msk [vmem:[%s232 + $0x78] sm:$0xff] %vm640, %v1580
        %1631 = vst [vmem:[%s232 + $0x80] sm:$0xff] %v1581
        %1632 = vst.msk [vmem:[%s232 + $0x88] sm:$0xff] %vm640, %v1582
        %1633 = vst [vmem:[%s232 + $0x90] sm:$0xff] %v1583
        %1634 = vst.msk [vmem:[%s232 + $0x98] sm:$0xff] %vm640, %v1584
        %1635 = vst [vmem:[%s232 + $0xa0] sm:$0xff] %v1585
        %1636 = vst.msk [vmem:[%s232 + $0xa8] sm:$0xff] %vm640, %v1586
        %1637 = vst [vmem:[%s232 + $0xb0] sm:$0xff] %v1587
        %1638 = vst.msk [vmem:[%s232 + $0xb8] sm:$0xff] %vm640, %v1588
        %1639 = vst [vmem:[%s232 + $0xc0] sm:$0xff] %v1589
        %1640 = vst.msk [vmem:[%s232 + $0xc8] sm:$0xff] %vm640, %v1590
        %1641 = vst [vmem:[%s232 + $0xd0] sm:$0xff] %v1591
        %1642 = vst.msk [vmem:[%s232 + $0xd8] sm:$0xff] %vm640, %v1592
        %1643 = vst [vmem:[%s232 + $0xe0] sm:$0xff] %v1593
        %1644 = vst.msk [vmem:[%s232 + $0xe8] sm:$0xff] %vm640, %v1594
        %1645 = vst [vmem:[%s232 + $0xf0] sm:$0xff] %v1595
        %1646 = vst.msk [vmem:[%s232 + $0xf8] sm:$0xff] %vm640, %v1596
        %1647 = vst [vmem:[%s232 + $0x100] sm:$0xff] %v1597
        %1648 = vst.msk [vmem:[%s232 + $0x108] sm:$0xff] %vm640, %v1598
        %1649 = vst [vmem:[%s232 + $0x110] sm:$0xff] %v1599
        %1650 = vst.msk [vmem:[%s232 + $0x118] sm:$0xff] %vm640, %v1600
        %1651 = vst [vmem:[%s232 + $0x120] sm:$0xff] %v1601
        %1652 = vst.msk [vmem:[%s232 + $0x128] sm:$0xff] %vm640, %v1602
        %1653 = vst [vmem:[%s232 + $0x130] sm:$0xff] %v1603
        %1654 = vst.msk [vmem:[%s232 + $0x138] sm:$0xff] %vm640, %v1604
        %1655 = vst [vmem:[%s232 + $0x140] sm:$0xff] %v1605
        %1656 = vst.msk [vmem:[%s232 + $0x148] sm:$0xff] %vm640, %v1606
        %1657 = vst [vmem:[%s232 + $0x150] sm:$0xff] %v1607
        %1658 = vst.msk [vmem:[%s232 + $0x158] sm:$0xff] %vm640, %v1608
        %1659 = vst [vmem:[%s232 + $0x160] sm:$0xff] %v1609
        %1660 = vst.msk [vmem:[%s232 + $0x168] sm:$0xff] %vm640, %v1610
        %1661 = vst [vmem:[%s232 + $0x170] sm:$0xff] %v1611
        %1662 = vst.msk [vmem:[%s232 + $0x178] sm:$0xff] %vm640, %v1612
        %1663 = vst [vmem:[%s232 + $0x180] sm:$0xff] %v1613
        %1664 = vst.msk [vmem:[%s232 + $0x188] sm:$0xff] %vm640, %v1614
        %s1665 = sand.u32 %s123, 1
        %s1666 = scalar_lea.sflag [#allocation4], %s1665
        %s1667 = sand.u32 %s123, 1
        %s1668 = smul.addr %s1667, 400
        %s1669 = scalar_lea.vmem [#allocation5], %s1668
        // Predicated region
        $region41: #{tpu_custom_call.1} parent=35 // pred_check
          %p1670 = pneg %p133
        $region42: #{tpu_custom_call.1} parent=35 // pred_check_branch
          %1672 = sbr.rel (%p1670) target = $region44
        $region43: #{tpu_custom_call.1} parent=35 // pred_region
          %s1673 = smul.u32 25, %s21
          %s1675 = ssub.s32 6400, 6400
          %1676 = vsyncadd %s1666, %s1675
          %s1677 = smul.addr %s1673, 2
          %s1678 = smul.addr %s1677, 128
          %s1679 = scalar_lea.hbm %s4, %s1678
          %s1680 = sshll.u32 %s1669, 4
          %s1681 = int_to_ptr.vmem [resolvable:$true] %s1680
          %1686 = dma.vmem_to_hbm [thread:$0]  %s1681, 6400, %s1679, %s1666, 256, 256, 16
        $region44: #{tpu_custom_call.1} parent=35 // pred_fallthru
          _
      $region36: #{tpu_custom_call.1} parent=5 // pred_fallthru
        _
      %p1687 = scmp.le.s32.totalorder 2, %s16
      // Predicated region
      $region45: #{tpu_custom_call.1} parent=5 // pred_check
        %p1688 = pneg %p1687
      $region46: #{tpu_custom_call.1} parent=5 // pred_check_branch
        %1690 = sbr.rel (%p1688) target = $region48
      $region47: #{tpu_custom_call.1} parent=5 // pred_region
        %s1691 = ssub.s32 %s16, 2
        // Predicated region
        $region49: #{tpu_custom_call.1} parent=47 // pred_check
          %p1692 = pneg %p139
        $region50: #{tpu_custom_call.1} parent=47 // pred_check_branch
          %1694 = sbr.rel (%p1692) target = $region52
        $region51: #{tpu_custom_call.1} parent=47 // pred_region
          %s1695 = sand.u32 %s124, 1
          %s1696 = scalar_lea.sflag [#allocation4], %s1695
          %s1697 = sand.u32 %s124, 1
          %s1698 = smul.addr %s1697, 400
          %s1699 = scalar_lea.vmem [#allocation5], %s1698
          %1700 = dma.done %s1696, 6400
        $region52: #{tpu_custom_call.1} parent=47 // pred_fallthru
          _
      $region48: #{tpu_custom_call.1} parent=5 // pred_fallthru
        _
    $region6: #{tpu_custom_call.1} parent=1 // loop_footer
      %s20 = sadd.s32 1, %s16
    $region7: #{tpu_custom_call.1} parent=1 // loop_footer_branch
      %15 = sbr.rel target = $region3
    $region8: #{tpu_custom_call.1} parent=1 // loop_exit
      _
    %1701 = vsyncpa [#allocation3], 1
    %s1702 = scalar_lea.sflag [#allocation3], 1
    %1703 = vsyncpa %s1702, 1
    %1704 = vsyncpa [#allocation4], 1
    %s1705 = scalar_lea.sflag [#allocation4], 1
    %1706 = vsyncpa %s1705, 1

</llo_original>
